<compile_context>
chip_gen: v7x
topology: tpu7x:2x2x1
jax: 0.10.0
libtpu: 0.0.40
codegen_flags: <defaults>
</compile_context>

<pallas_src>
import functools
import math

import jax
import jax.numpy as jnp
from jax import lax
from jax.experimental import pallas as pl
from jax.experimental.pallas import tpu as pltpu


# ----------------------------------------------------------------------------
# Kernel: grid = (batch, num_q_tiles).  At qi == 0 the latent and the
# reconstructed K/V for the whole sequence are computed into VMEM scratch;
# every q-tile then does per-head attention against that scratch and
# accumulates directly through W_o.
# ----------------------------------------------------------------------------
def mhla_kernel(x_ref, wq_ref, wkvd_ref, wupk_ref, wupv_ref, wo_ref,
                out_ref, latent_ref,
                krec_ref, vrec_ref,
                *, num_heads, tq):
    S, D = x_ref.shape
    dh = D // num_heads
    cdtype = x_ref.dtype                      # compute dtype fed to the MXU
    qi = pl.program_id(1)

    # --- per-batch preamble: latent + reconstructed K/V (once per b) --------
    @pl.when(qi == 0)
    def _():
        x = x_ref[...]                                                    # (S, D)
        latent = jnp.dot(x, wkvd_ref[...],
                         preferred_element_type=jnp.float32)             # (S, L)
        latent_ref[...] = latent.astype(latent_ref.dtype)
        latent_c = latent.astype(cdtype)
        krec_ref[...] = jnp.dot(latent_c, wupk_ref[...],
                                preferred_element_type=jnp.float32).astype(cdtype)
        vrec_ref[...] = jnp.dot(latent_c, wupv_ref[...],
                                preferred_element_type=jnp.float32).astype(cdtype)

    # --- q projection for this tile (scale already folded into W_q) ---------
    q_start = pl.multiple_of(qi * tq, tq)
    x_q = x_ref[pl.ds(q_start, tq), :]                                    # (tq, D)
    q = jnp.dot(x_q, wq_ref[...],
                preferred_element_type=jnp.float32).astype(cdtype)        # (tq, D)

    # --- per-head attention, accumulated through W_o -------------------------
    out_acc = jnp.zeros((tq, D), jnp.float32)
    for h in range(num_heads):                                            # static unroll
        sl = slice(h * dh, (h + 1) * dh)
        qh = q[:, sl]                                                     # (tq, dh)
        kh = krec_ref[:, sl]                                              # (S,  dh)
        vh = vrec_ref[:, sl]                                              # (S,  dh)
        woh = wo_ref[sl, :]                                               # (dh, D)

        # scores: contract the shared last dim (no explicit transpose).
        s = lax.dot_general(qh, kh, (((1,), (1,)), ((), ())),
                            preferred_element_type=jnp.float32)           # (tq, S)
        s = jnp.nan_to_num(s, nan=0.0, posinf=10.0, neginf=-10.0)

        # numerically stable softmax; divide goes to the EUP via reciprocal.
        m = jnp.max(s, axis=-1, keepdims=True)
        e = jnp.exp(s - m)
        p = e * pl.reciprocal(jnp.sum(e, axis=-1, keepdims=True), approx=True)

        oh = jnp.dot(p.astype(cdtype), vh,
                     preferred_element_type=jnp.float32)                  # (tq, dh)
        out_acc = out_acc + jnp.dot(oh.astype(cdtype), woh,
                                    preferred_element_type=jnp.float32)   # (tq, D)

    out_ref[...] = out_acc.astype(out_ref.dtype)


def _choose_q_tile(S, target=256):
    if S <= target:
        return S
    for t in range(target, 7, -1):
        if S % t == 0 and t % 8 == 0:
            return t
    return S


# ----------------------------------------------------------------------------
# Wrapper: pre-folds weights ((out,in) -> (in,out), K/V fused into the latent
# projection, scale folded into W_q), sets up grid / BlockSpecs / VMEM budget.
# ----------------------------------------------------------------------------
def mhla_forward(x, params, num_heads):
    B, S, D = x.shape
    L = params["W_down_kv"].shape[0]          # W_down_kv: (d_latent, d_model)
    assert D % num_heads == 0
    dtype = x.dtype

    f32 = lambda w: jnp.asarray(w, jnp.float32)
    scale = 1.0 / math.sqrt(D)                # note: d_model (matches reference)

    wq = (f32(params["W_q"]).T * scale).astype(dtype)                       # (D, D)
    # latent = (x@Wk^T + x@Wv^T) @ Wdown^T  ==  x @ ((Wk+Wv)^T @ Wdown^T)
    wkvd = ((f32(params["W_k"]) + f32(params["W_v"])).T
            @ f32(params["W_down_kv"]).T).astype(dtype)                     # (D, L)
    wupk = f32(params["W_up_k"]).T.astype(dtype)                            # (L, D)
    wupv = f32(params["W_up_v"]).T.astype(dtype)                            # (L, D)
    wo = f32(params["W_o"]).T.astype(dtype)                                 # (D, D)

    tq = _choose_q_tile(S)
    assert S % tq == 0
    nq = S // tq

    # Explicit VMEM budget (weights single-buffered + io blocks + scratch +
    # f32 intermediates), clamped to [32 MiB, 64 MiB] so it is portable to v7x.
    itemsize = jnp.dtype(dtype).itemsize
    weight_b = (wq.size + wkvd.size + wupk.size + wupv.size + wo.size) * itemsize
    io_b = 2 * (S * D + tq * D + S * L) * itemsize
    scratch_b = 2 * S * D * itemsize
    interm_b = (3 * tq * S + 8 * tq * D) * 4
    vmem_limit = int(min(max(2 * (weight_b + io_b + scratch_b + interm_b),
                             32 * 2 ** 20), 64 * 2 ** 20))

    kernel = functools.partial(mhla_kernel, num_heads=num_heads, tq=tq)
    vmem_full = pl.BlockSpec(memory_space=pltpu.MemorySpace.VMEM)   # whole array, single copy

    out, latent = pl.pallas_call(
        kernel,
        out_shape=(
            jax.ShapeDtypeStruct((B, S, D), dtype),
            jax.ShapeDtypeStruct((B, S, L), dtype),
        ),
        grid_spec=pltpu.PrefetchScalarGridSpec(
            num_scalar_prefetch=0,
            grid=(B, nq),
            in_specs=[
                pl.BlockSpec((None, S, D), lambda b, qi: (b, 0, 0)),    # x (resident per b)
                vmem_full,                                              # W_q (scaled)
                vmem_full,                                              # fused (Wk+Wv)->latent
                vmem_full,                                              # W_up_k
                vmem_full,                                              # W_up_v
                vmem_full,                                              # W_o
            ],
            out_specs=(
                pl.BlockSpec((None, tq, D), lambda b, qi: (b, qi, 0)),  # output tile
                pl.BlockSpec((None, S, L), lambda b, qi: (b, 0, 0)),    # latent (written at qi==0)
            ),
            scratch_shapes=[
                pltpu.VMEM((S, D), dtype),   # reconstructed K
                pltpu.VMEM((S, D), dtype),   # reconstructed V
            ],
        ),
        compiler_params=pltpu.CompilerParams(
            dimension_semantics=("parallel", "arbitrary"),
            vmem_limit_bytes=vmem_limit,
        ),
    )(x, wq, wkvd, wupk, wupv, wo)
    return out, latent


# ----------------------------------------------------------------------------
# Pure-JAX reference (mirrors the PyTorch forward, memory=None), unfused, f32.
# ----------------------------------------------------------------------------
def mhla_reference(x, params, num_heads):
    B, S, D = x.shape
    xf = x.astype(jnp.float32)
    q = xf @ params["W_q"].T
    k = xf @ params["W_k"].T
    v = xf @ params["W_v"].T
    latent = (k + v) @ params["W_down_kv"].T
    k_rec = latent @ params["W_up_k"].T
    v_rec = latent @ params["W_up_v"].T

    dh = D // num_heads
    qh = q.reshape(B, S, num_heads, dh).transpose(0, 2, 1, 3)
    kh = k_rec.reshape(B, S, num_heads, dh).transpose(0, 2, 1, 3)
    vh = v_rec.reshape(B, S, num_heads, dh).transpose(0, 2, 1, 3)

    attn = jnp.einsum("bhqd,bhkd->bhqk", qh, kh) / math.sqrt(D)
    attn = jnp.nan_to_num(attn, nan=0.0, posinf=10.0, neginf=-10.0)
    attn = jax.nn.softmax(attn, axis=-1)
    o = jnp.einsum("bhqk,bhkd->bhqd", attn, vh)
    o = o.transpose(0, 2, 1, 3).reshape(B, S, D)
    out = o @ params["W_o"].T
    return out, latent


if __name__ == "__main__":
    # Small, shape-consistent configuration.
    B, S = 2, 8
    d_model, num_heads, d_latent = 32, 4, 16

    key = jax.random.PRNGKey(0)
    keys = jax.random.split(key, 8)

    def init_linear(k, out_dim, in_dim):
        bound = 1.0 / math.sqrt(in_dim)
        return jax.random.uniform(k, (out_dim, in_dim), jnp.float32,
                                  minval=-bound, maxval=bound)

    params = {
        "W_q": init_linear(keys[0], d_model, d_model),
        "W_k": init_linear(keys[1], d_model, d_model),
        "W_v": init_linear(keys[2], d_model, d_model),
        "W_o": init_linear(keys[3], d_model, d_model),
        "W_down_kv": init_linear(keys[4], d_latent, d_model),
        "W_up_k": init_linear(keys[5], d_model, d_latent),
        "W_up_v": init_linear(keys[6], d_model, d_latent),
    }

    x = jax.random.normal(keys[7], (B, S, d_model), jnp.float32)

    # f32 path: fairly tight check (approx reciprocal + weight fusion allowed for).
    out, latent = mhla_forward(x, params, num_heads)
    out = jax.block_until_ready(out)
    latent = jax.block_until_ready(latent)

    ref_out, ref_latent = mhla_reference(x, params, num_heads)

    assert out.shape == (B, S, d_model)
    assert latent.shape == (B, S, d_latent)
    assert jnp.allclose(latent, ref_latent, atol=1e-3, rtol=1e-3)
    assert jnp.allclose(out, ref_out, atol=2e-2, rtol=2e-2)

    # bf16 path (native MXU dtype, halved VMEM/DMA): loose tolerance vs f32 ref.
    out_bf, lat_bf = mhla_forward(x.astype(jnp.bfloat16), params, num_heads)
    out_bf = jax.block_until_ready(out_bf)
    lat_bf = jax.block_until_ready(lat_bf)
    assert jnp.all(jnp.isfinite(out_bf.astype(jnp.float32)))
    assert jnp.allclose(out_bf.astype(jnp.float32), ref_out, atol=1e-1, rtol=1e-1)
    assert jnp.allclose(lat_bf.astype(jnp.float32), ref_latent, atol=1e-1, rtol=1e-1)

    print("KERNEL_OK")
</pallas_src>

<mosaic_0001>
module attributes {stable_mosaic.version = 11 : i64} {
  func.func @mhla_kernel(%arg0: i32, %arg1: i32, %arg2: memref<1x8x32xf32, #tpu.memory_space<vmem>>, %arg3: memref<32x32xf32, #tpu.memory_space<vmem>>, %arg4: memref<32x16xf32, #tpu.memory_space<vmem>>, %arg5: memref<16x32xf32, #tpu.memory_space<vmem>>, %arg6: memref<16x32xf32, #tpu.memory_space<vmem>>, %arg7: memref<32x32xf32, #tpu.memory_space<vmem>>, %arg8: memref<1x8x32xf32, #tpu.memory_space<vmem>>, %arg9: memref<1x8x16xf32, #tpu.memory_space<vmem>>, %arg10: memref<8x32xf32, #tpu.memory_space<vmem>>, %arg11: memref<8x32xf32, #tpu.memory_space<vmem>>) attributes {dimension_semantics = [#tpu.dimension_semantics<parallel>, #tpu.dimension_semantics<arbitrary>], iteration_bounds = array<i64: 2, 1>, scalar_prefetch = 0 : i64, scratch_operands = 2 : i64, tpu.core_type = #tpu.core_type<tc>, window_params = [{transform_indices = @transform_0, window_bounds = array<i64: 1, 8, 32>}, {pipeline_mode = #tpu.pipeline_mode<synchronous>, transform_indices = @transform_1, window_bounds = array<i64: 32, 32>}, {pipeline_mode = #tpu.pipeline_mode<synchronous>, transform_indices = @transform_2, window_bounds = array<i64: 32, 16>}, {pipeline_mode = #tpu.pipeline_mode<synchronous>, transform_indices = @transform_3, window_bounds = array<i64: 16, 32>}, {pipeline_mode = #tpu.pipeline_mode<synchronous>, transform_indices = @transform_4, window_bounds = array<i64: 16, 32>}, {pipeline_mode = #tpu.pipeline_mode<synchronous>, transform_indices = @transform_5, window_bounds = array<i64: 32, 32>}, {transform_indices = @transform_6, window_bounds = array<i64: 1, 8, 32>}, {transform_indices = @transform_7, window_bounds = array<i64: 1, 8, 16>}]} {
    %c0_i32 = arith.constant 0 : i32
    %0 = arith.cmpi eq, %arg1, %c0_i32 : i32
    %1 = arith.extui %0 : i1 to i32
    %c0_i32_0 = arith.constant 0 : i32
    %2 = arith.cmpi ne, %1, %c0_i32_0 : i32
    scf.if %2 {
      %c0_69 = arith.constant 0 : index
      %c0_70 = arith.constant 0 : index
      %c0_71 = arith.constant 0 : index
      %130 = vector.load %arg2[%c0_69, %c0_70, %c0_71] : memref<1x8x32xf32, #tpu.memory_space<vmem>>, vector<1x8x32xf32>
      %131 = vector.shape_cast %130 : vector<1x8x32xf32> to vector<8x32xf32>
      %c0_72 = arith.constant 0 : index
      %c0_73 = arith.constant 0 : index
      %132 = vector.load %arg4[%c0_72, %c0_73] : memref<32x16xf32, #tpu.memory_space<vmem>>, vector<32x16xf32>
      %cst_74 = arith.constant dense<0.000000e+00> : vector<8x16xf32>
      %133 = tpu.matmul %131, %132, %cst_74 {dimension_numbers = #tpu.dot_dimension_numbers<[1], [0], [0], [1], [0, 0, 1, 1], [], []>} : vector<8x32xf32>, vector<32x16xf32>, vector<8x16xf32> -> vector<8x16xf32>
      %c0_75 = arith.constant 0 : index
      %c0_76 = arith.constant 0 : index
      %c0_77 = arith.constant 0 : index
      %134 = vector.load %arg9[%c0_75, %c0_76, %c0_77] : memref<1x8x16xf32, #tpu.memory_space<vmem>>, vector<1x8x16xf32>
      %135 = vector.shape_cast %134 : vector<1x8x16xf32> to vector<8x16xf32>
      %136 = vector.shape_cast %133 : vector<8x16xf32> to vector<1x8x16xf32>
      tpu.vector_store %arg9[%c0_75, %c0_76, %c0_77], %136 {strides = array<i32>} : memref<1x8x16xf32, #tpu.memory_space<vmem>>, vector<1x8x16xf32>,
      %c0_78 = arith.constant 0 : index
      %c0_79 = arith.constant 0 : index
      %137 = vector.load %arg5[%c0_78, %c0_79] : memref<16x32xf32, #tpu.memory_space<vmem>>, vector<16x32xf32>
      %cst_80 = arith.constant dense<0.000000e+00> : vector<8x32xf32>
      %138 = tpu.matmul %133, %137, %cst_80 {dimension_numbers = #tpu.dot_dimension_numbers<[1], [0], [0], [1], [0, 0, 1, 1], [], []>} : vector<8x16xf32>, vector<16x32xf32>, vector<8x32xf32> -> vector<8x32xf32>
      %c0_81 = arith.constant 0 : index
      %c0_82 = arith.constant 0 : index
      %139 = vector.load %arg10[%c0_81, %c0_82] : memref<8x32xf32, #tpu.memory_space<vmem>>, vector<8x32xf32>
      tpu.vector_store %arg10[%c0_81, %c0_82], %138 {strides = array<i32>} : memref<8x32xf32, #tpu.memory_space<vmem>>, vector<8x32xf32>,
      %c0_83 = arith.constant 0 : index
      %c0_84 = arith.constant 0 : index
      %140 = vector.load %arg6[%c0_83, %c0_84] : memref<16x32xf32, #tpu.memory_space<vmem>>, vector<16x32xf32>
      %cst_85 = arith.constant dense<0.000000e+00> : vector<8x32xf32>
      %141 = tpu.matmul %133, %140, %cst_85 {dimension_numbers = #tpu.dot_dimension_numbers<[1], [0], [0], [1], [0, 0, 1, 1], [], []>} : vector<8x16xf32>, vector<16x32xf32>, vector<8x32xf32> -> vector<8x32xf32>
      %c0_86 = arith.constant 0 : index
      %c0_87 = arith.constant 0 : index
      %142 = vector.load %arg11[%c0_86, %c0_87] : memref<8x32xf32, #tpu.memory_space<vmem>>, vector<8x32xf32>
      tpu.vector_store %arg11[%c0_86, %c0_87], %141 {strides = array<i32>} : memref<8x32xf32, #tpu.memory_space<vmem>>, vector<8x32xf32>,
    } else {
    }
    %c8_i32 = arith.constant 8 : i32
    %3 = arith.muli %arg1, %c8_i32 : i32
    %4 = tpu.assume_multiple %3, 8 : i32
    %c0 = arith.constant 0 : index
    %5 = arith.index_cast %4 : i32 to index
    %c0_1 = arith.constant 0 : index
    %6 = vector.load %arg2[%c0, %5, %c0_1] : memref<1x8x32xf32, #tpu.memory_space<vmem>>, vector<1x8x32xf32>
    %7 = vector.shape_cast %6 : vector<1x8x32xf32> to vector<8x32xf32>
    %c0_2 = arith.constant 0 : index
    %c0_3 = arith.constant 0 : index
    %8 = vector.load %arg3[%c0_2, %c0_3] : memref<32x32xf32, #tpu.memory_space<vmem>>, vector<32x32xf32>
    %cst = arith.constant dense<0.000000e+00> : vector<8x32xf32>
    %9 = tpu.matmul %7, %8, %cst {dimension_numbers = #tpu.dot_dimension_numbers<[1], [0], [0], [1], [0, 0, 1, 1], [], []>} : vector<8x32xf32>, vector<32x32xf32>, vector<8x32xf32> -> vector<8x32xf32>
    %cst_4 = arith.constant 0.000000e+00 : f32
    %10 = vector.broadcast %cst_4 : f32 to vector<8x32xf32>
    %11 = vector.extract_strided_slice %9 {offsets = [0, 0], sizes = [8, 8], strides = [1, 1]} : vector<8x32xf32> to vector<8x8xf32>
    %c0_5 = arith.constant 0 : index
    %c0_6 = arith.constant 0 : index
    %12 = vector.load %arg10[%c0_5, %c0_6] : memref<8x32xf32, #tpu.memory_space<vmem>>, vector<8x8xf32>
    %c0_7 = arith.constant 0 : index
    %c0_8 = arith.constant 0 : index
    %13 = vector.load %arg11[%c0_7, %c0_8] : memref<8x32xf32, #tpu.memory_space<vmem>>, vector<8x8xf32>
    %c0_9 = arith.constant 0 : index
    %c0_10 = arith.constant 0 : index
    %14 = vector.load %arg7[%c0_9, %c0_10] : memref<32x32xf32, #tpu.memory_space<vmem>>, vector<8x32xf32>
    %cst_11 = arith.constant dense<0.000000e+00> : vector<8x8xf32>
    %15 = tpu.matmul %11, %12, %cst_11 {dimension_numbers = #tpu.dot_dimension_numbers<[1], [1], [0], [0], [0, 0, 1, 0], [], []>} : vector<8x8xf32>, vector<8x8xf32>, vector<8x8xf32> -> vector<8x8xf32>
    %cst_12 = arith.constant 0.000000e+00 : f32
    %cst_13 = arith.constant -1.000000e+01 : f32
    %cst_14 = arith.constant 1.000000e+01 : f32
    %16 = arith.cmpf one, %15, %15 : vector<8x8xf32>
    %17 = vector.broadcast %cst_12 : f32 to vector<8x8xf32>
    %18 = arith.select %16, %17, %15 : vector<8x8xi1>, vector<8x8xf32>
    %cst_15 = arith.constant 0x7F800000 : f32
    %19 = vector.broadcast %cst_15 : f32 to vector<8x8xf32>
    %20 = arith.cmpf oeq, %18, %19 : vector<8x8xf32>
    %21 = vector.broadcast %cst_14 : f32 to vector<8x8xf32>
    %22 = arith.select %20, %21, %18 : vector<8x8xi1>, vector<8x8xf32>
    %cst_16 = arith.constant 0xFF800000 : f32
    %23 = vector.broadcast %cst_16 : f32 to vector<8x8xf32>
    %24 = arith.cmpf oeq, %22, %23 : vector<8x8xf32>
    %25 = vector.broadcast %cst_13 : f32 to vector<8x8xf32>
    %26 = arith.select %24, %25, %22 : vector<8x8xi1>, vector<8x8xf32>
    %cst_17 = arith.constant dense<0xFF800000> : vector<8xf32>
    %27 = vector.multi_reduction <maximumf>, %26, %cst_17 [1] : vector<8x8xf32> to vector<8xf32>
    %28 = vector.shape_cast %27 : vector<8xf32> to vector<8x1xf32>
    %29 = vector.broadcast %28 : vector<8x1xf32> to vector<8x8xf32>
    %30 = arith.subf %26, %29 : vector<8x8xf32>
    %31 = math.exp %30 : vector<8x8xf32>
    %cst_18 = arith.constant dense<0.000000e+00> : vector<8xf32>
    %32 = vector.multi_reduction <add>, %31, %cst_18 [1] : vector<8x8xf32> to vector<8xf32>
    %33 = vector.shape_cast %32 : vector<8xf32> to vector<8x1xf32>
    %34 = tpu.reciprocal %33 {approx = true} : vector<8x1xf32> -> vector<8x1xf32>
    %35 = vector.broadcast %34 : vector<8x1xf32> to vector<8x8xf32>
    %36 = arith.mulf %31, %35 : vector<8x8xf32>
    %cst_19 = arith.constant dense<0.000000e+00> : vector<8x8xf32>
    %37 = tpu.matmul %36, %13, %cst_19 {dimension_numbers = #tpu.dot_dimension_numbers<[1], [0], [0], [1], [0, 0, 1, 1], [], []>} : vector<8x8xf32>, vector<8x8xf32>, vector<8x8xf32> -> vector<8x8xf32>
    %cst_20 = arith.constant dense<0.000000e+00> : vector<8x32xf32>
    %38 = tpu.matmul %37, %14, %cst_20 {dimension_numbers = #tpu.dot_dimension_numbers<[1], [0], [0], [1], [0, 0, 1, 1], [], []>} : vector<8x8xf32>, vector<8x32xf32>, vector<8x32xf32> -> vector<8x32xf32>
    %39 = arith.addf %10, %38 : vector<8x32xf32>
    %40 = vector.extract_strided_slice %9 {offsets = [0, 8], sizes = [8, 8], strides = [1, 1]} : vector<8x32xf32> to vector<8x8xf32>
    %c0_21 = arith.constant 0 : index
    %c8 = arith.constant 8 : index
    %41 = vector.load %arg10[%c0_21, %c8] : memref<8x32xf32, #tpu.memory_space<vmem>>, vector<8x8xf32>
    %c0_22 = arith.constant 0 : index
    %c8_23 = arith.constant 8 : index
    %42 = vector.load %arg11[%c0_22, %c8_23] : memref<8x32xf32, #tpu.memory_space<vmem>>, vector<8x8xf32>
    %c8_24 = arith.constant 8 : index
    %c0_25 = arith.constant 0 : index
    %43 = vector.load %arg7[%c8_24, %c0_25] : memref<32x32xf32, #tpu.memory_space<vmem>>, vector<8x32xf32>
    %cst_26 = arith.constant dense<0.000000e+00> : vector<8x8xf32>
    %44 = tpu.matmul %40, %41, %cst_26 {dimension_numbers = #tpu.dot_dimension_numbers<[1], [1], [0], [0], [0, 0, 1, 0], [], []>} : vector<8x8xf32>, vector<8x8xf32>, vector<8x8xf32> -> vector<8x8xf32>
    %cst_27 = arith.constant 0.000000e+00 : f32
    %cst_28 = arith.constant -1.000000e+01 : f32
    %cst_29 = arith.constant 1.000000e+01 : f32
    %45 = arith.cmpf one, %44, %44 : vector<8x8xf32>
    %46 = vector.broadcast %cst_27 : f32 to vector<8x8xf32>
    %47 = arith.select %45, %46, %44 : vector<8x8xi1>, vector<8x8xf32>
    %cst_30 = arith.constant 0x7F800000 : f32
    %48 = vector.broadcast %cst_30 : f32 to vector<8x8xf32>
    %49 = arith.cmpf oeq, %47, %48 : vector<8x8xf32>
    %50 = vector.broadcast %cst_29 : f32 to vector<8x8xf32>
    %51 = arith.select %49, %50, %47 : vector<8x8xi1>, vector<8x8xf32>
    %cst_31 = arith.constant 0xFF800000 : f32
    %52 = vector.broadcast %cst_31 : f32 to vector<8x8xf32>
    %53 = arith.cmpf oeq, %51, %52 : vector<8x8xf32>
    %54 = vector.broadcast %cst_28 : f32 to vector<8x8xf32>
    %55 = arith.select %53, %54, %51 : vector<8x8xi1>, vector<8x8xf32>
    %cst_32 = arith.constant dense<0xFF800000> : vector<8xf32>
    %56 = vector.multi_reduction <maximumf>, %55, %cst_32 [1] : vector<8x8xf32> to vector<8xf32>
    %57 = vector.shape_cast %56 : vector<8xf32> to vector<8x1xf32>
    %58 = vector.broadcast %57 : vector<8x1xf32> to vector<8x8xf32>
    %59 = arith.subf %55, %58 : vector<8x8xf32>
    %60 = math.exp %59 : vector<8x8xf32>
    %cst_33 = arith.constant dense<0.000000e+00> : vector<8xf32>
    %61 = vector.multi_reduction <add>, %60, %cst_33 [1] : vector<8x8xf32> to vector<8xf32>
    %62 = vector.shape_cast %61 : vector<8xf32> to vector<8x1xf32>
    %63 = tpu.reciprocal %62 {approx = true} : vector<8x1xf32> -> vector<8x1xf32>
    %64 = vector.broadcast %63 : vector<8x1xf32> to vector<8x8xf32>
    %65 = arith.mulf %60, %64 : vector<8x8xf32>
    %cst_34 = arith.constant dense<0.000000e+00> : vector<8x8xf32>
    %66 = tpu.matmul %65, %42, %cst_34 {dimension_numbers = #tpu.dot_dimension_numbers<[1], [0], [0], [1], [0, 0, 1, 1], [], []>} : vector<8x8xf32>, vector<8x8xf32>, vector<8x8xf32> -> vector<8x8xf32>
    %cst_35 = arith.constant dense<0.000000e+00> : vector<8x32xf32>
    %67 = tpu.matmul %66, %43, %cst_35 {dimension_numbers = #tpu.dot_dimension_numbers<[1], [0], [0], [1], [0, 0, 1, 1], [], []>} : vector<8x8xf32>, vector<8x32xf32>, vector<8x32xf32> -> vector<8x32xf32>
    %68 = arith.addf %39, %67 : vector<8x32xf32>
    %69 = vector.extract_strided_slice %9 {offsets = [0, 16], sizes = [8, 8], strides = [1, 1]} : vector<8x32xf32> to vector<8x8xf32>
    %c0_36 = arith.constant 0 : index
    %c16 = arith.constant 16 : index
    %70 = vector.load %arg10[%c0_36, %c16] : memref<8x32xf32, #tpu.memory_space<vmem>>, vector<8x8xf32>
    %c0_37 = arith.constant 0 : index
    %c16_38 = arith.constant 16 : index
    %71 = vector.load %arg11[%c0_37, %c16_38] : memref<8x32xf32, #tpu.memory_space<vmem>>, vector<8x8xf32>
    %c16_39 = arith.constant 16 : index
    %c0_40 = arith.constant 0 : index
    %72 = vector.load %arg7[%c16_39, %c0_40] : memref<32x32xf32, #tpu.memory_space<vmem>>, vector<8x32xf32>
    %cst_41 = arith.constant dense<0.000000e+00> : vector<8x8xf32>
    %73 = tpu.matmul %69, %70, %cst_41 {dimension_numbers = #tpu.dot_dimension_numbers<[1], [1], [0], [0], [0, 0, 1, 0], [], []>} : vector<8x8xf32>, vector<8x8xf32>, vector<8x8xf32> -> vector<8x8xf32>
    %cst_42 = arith.constant 0.000000e+00 : f32
    %cst_43 = arith.constant -1.000000e+01 : f32
    %cst_44 = arith.constant 1.000000e+01 : f32
    %74 = arith.cmpf one, %73, %73 : vector<8x8xf32>
    %75 = vector.broadcast %cst_42 : f32 to vector<8x8xf32>
    %76 = arith.select %74, %75, %73 : vector<8x8xi1>, vector<8x8xf32>
    %cst_45 = arith.constant 0x7F800000 : f32
    %77 = vector.broadcast %cst_45 : f32 to vector<8x8xf32>
    %78 = arith.cmpf oeq, %76, %77 : vector<8x8xf32>
    %79 = vector.broadcast %cst_44 : f32 to vector<8x8xf32>
    %80 = arith.select %78, %79, %76 : vector<8x8xi1>, vector<8x8xf32>
    %cst_46 = arith.constant 0xFF800000 : f32
    %81 = vector.broadcast %cst_46 : f32 to vector<8x8xf32>
    %82 = arith.cmpf oeq, %80, %81 : vector<8x8xf32>
    %83 = vector.broadcast %cst_43 : f32 to vector<8x8xf32>
    %84 = arith.select %82, %83, %80 : vector<8x8xi1>, vector<8x8xf32>
    %cst_47 = arith.constant dense<0xFF800000> : vector<8xf32>
    %85 = vector.multi_reduction <maximumf>, %84, %cst_47 [1] : vector<8x8xf32> to vector<8xf32>
    %86 = vector.shape_cast %85 : vector<8xf32> to vector<8x1xf32>
    %87 = vector.broadcast %86 : vector<8x1xf32> to vector<8x8xf32>
    %88 = arith.subf %84, %87 : vector<8x8xf32>
    %89 = math.exp %88 : vector<8x8xf32>
    %cst_48 = arith.constant dense<0.000000e+00> : vector<8xf32>
    %90 = vector.multi_reduction <add>, %89, %cst_48 [1] : vector<8x8xf32> to vector<8xf32>
    %91 = vector.shape_cast %90 : vector<8xf32> to vector<8x1xf32>
    %92 = tpu.reciprocal %91 {approx = true} : vector<8x1xf32> -> vector<8x1xf32>
    %93 = vector.broadcast %92 : vector<8x1xf32> to vector<8x8xf32>
    %94 = arith.mulf %89, %93 : vector<8x8xf32>
    %cst_49 = arith.constant dense<0.000000e+00> : vector<8x8xf32>
    %95 = tpu.matmul %94, %71, %cst_49 {dimension_numbers = #tpu.dot_dimension_numbers<[1], [0], [0], [1], [0, 0, 1, 1], [], []>} : vector<8x8xf32>, vector<8x8xf32>, vector<8x8xf32> -> vector<8x8xf32>
    %cst_50 = arith.constant dense<0.000000e+00> : vector<8x32xf32>
    %96 = tpu.matmul %95, %72, %cst_50 {dimension_numbers = #tpu.dot_dimension_numbers<[1], [0], [0], [1], [0, 0, 1, 1], [], []>} : vector<8x8xf32>, vector<8x32xf32>, vector<8x32xf32> -> vector<8x32xf32>
    %97 = arith.addf %68, %96 : vector<8x32xf32>
    %98 = vector.extract_strided_slice %9 {offsets = [0, 24], sizes = [8, 8], strides = [1, 1]} : vector<8x32xf32> to vector<8x8xf32>
    %c0_51 = arith.constant 0 : index
    %c24 = arith.constant 24 : index
    %99 = vector.load %arg10[%c0_51, %c24] : memref<8x32xf32, #tpu.memory_space<vmem>>, vector<8x8xf32>
    %c0_52 = arith.constant 0 : index
    %c24_53 = arith.constant 24 : index
    %100 = vector.load %arg11[%c0_52, %c24_53] : memref<8x32xf32, #tpu.memory_space<vmem>>, vector<8x8xf32>
    %c24_54 = arith.constant 24 : index
    %c0_55 = arith.constant 0 : index
    %101 = vector.load %arg7[%c24_54, %c0_55] : memref<32x32xf32, #tpu.memory_space<vmem>>, vector<8x32xf32>
    %cst_56 = arith.constant dense<0.000000e+00> : vector<8x8xf32>
    %102 = tpu.matmul %98, %99, %cst_56 {dimension_numbers = #tpu.dot_dimension_numbers<[1], [1], [0], [0], [0, 0, 1, 0], [], []>} : vector<8x8xf32>, vector<8x8xf32>, vector<8x8xf32> -> vector<8x8xf32>
    %cst_57 = arith.constant 0.000000e+00 : f32
    %cst_58 = arith.constant -1.000000e+01 : f32
    %cst_59 = arith.constant 1.000000e+01 : f32
    %103 = arith.cmpf one, %102, %102 : vector<8x8xf32>
    %104 = vector.broadcast %cst_57 : f32 to vector<8x8xf32>
    %105 = arith.select %103, %104, %102 : vector<8x8xi1>, vector<8x8xf32>
    %cst_60 = arith.constant 0x7F800000 : f32
    %106 = vector.broadcast %cst_60 : f32 to vector<8x8xf32>
    %107 = arith.cmpf oeq, %105, %106 : vector<8x8xf32>
    %108 = vector.broadcast %cst_59 : f32 to vector<8x8xf32>
    %109 = arith.select %107, %108, %105 : vector<8x8xi1>, vector<8x8xf32>
    %cst_61 = arith.constant 0xFF800000 : f32
    %110 = vector.broadcast %cst_61 : f32 to vector<8x8xf32>
    %111 = arith.cmpf oeq, %109, %110 : vector<8x8xf32>
    %112 = vector.broadcast %cst_58 : f32 to vector<8x8xf32>
    %113 = arith.select %111, %112, %109 : vector<8x8xi1>, vector<8x8xf32>
    %cst_62 = arith.constant dense<0xFF800000> : vector<8xf32>
    %114 = vector.multi_reduction <maximumf>, %113, %cst_62 [1] : vector<8x8xf32> to vector<8xf32>
    %115 = vector.shape_cast %114 : vector<8xf32> to vector<8x1xf32>
    %116 = vector.broadcast %115 : vector<8x1xf32> to vector<8x8xf32>
    %117 = arith.subf %113, %116 : vector<8x8xf32>
    %118 = math.exp %117 : vector<8x8xf32>
    %cst_63 = arith.constant dense<0.000000e+00> : vector<8xf32>
    %119 = vector.multi_reduction <add>, %118, %cst_63 [1] : vector<8x8xf32> to vector<8xf32>
    %120 = vector.shape_cast %119 : vector<8xf32> to vector<8x1xf32>
    %121 = tpu.reciprocal %120 {approx = true} : vector<8x1xf32> -> vector<8x1xf32>
    %122 = vector.broadcast %121 : vector<8x1xf32> to vector<8x8xf32>
    %123 = arith.mulf %118, %122 : vector<8x8xf32>
    %cst_64 = arith.constant dense<0.000000e+00> : vector<8x8xf32>
    %124 = tpu.matmul %123, %100, %cst_64 {dimension_numbers = #tpu.dot_dimension_numbers<[1], [0], [0], [1], [0, 0, 1, 1], [], []>} : vector<8x8xf32>, vector<8x8xf32>, vector<8x8xf32> -> vector<8x8xf32>
    %cst_65 = arith.constant dense<0.000000e+00> : vector<8x32xf32>
    %125 = tpu.matmul %124, %101, %cst_65 {dimension_numbers = #tpu.dot_dimension_numbers<[1], [0], [0], [1], [0, 0, 1, 1], [], []>} : vector<8x8xf32>, vector<8x32xf32>, vector<8x32xf32> -> vector<8x32xf32>
    %126 = arith.addf %97, %125 : vector<8x32xf32>
    %c0_66 = arith.constant 0 : index
    %c0_67 = arith.constant 0 : index
    %c0_68 = arith.constant 0 : index
    %127 = vector.load %arg8[%c0_66, %c0_67, %c0_68] : memref<1x8x32xf32, #tpu.memory_space<vmem>>, vector<1x8x32xf32>
    %128 = vector.shape_cast %127 : vector<1x8x32xf32> to vector<8x32xf32>
    %129 = vector.shape_cast %126 : vector<8x32xf32> to vector<1x8x32xf32>
    tpu.vector_store %arg8[%c0_66, %c0_67, %c0_68], %129 {strides = array<i32>} : memref<1x8x32xf32, #tpu.memory_space<vmem>>, vector<1x8x32xf32>,
    return
  }
  func.func @transform_0(%arg0: i32, %arg1: i32) -> (i32, i32, i32) {
    %c0_i32 = arith.constant 0 : i32
    %c0_i32_0 = arith.constant 0 : i32
    %c0_i32_1 = arith.constant 0 : i32
    return %arg0, %c0_i32, %c0_i32_0 : i32, i32, i32
  }
  func.func @transform_1(%arg0: i32, %arg1: i32) -> (i32, i32) {
    %c0_i32 = arith.constant 0 : i32
    %c0_i32_0 = arith.constant 0 : i32
    %c0_i32_1 = arith.constant 0 : i32
    return %c0_i32, %c0_i32_0 : i32, i32
  }
  func.func @transform_2(%arg0: i32, %arg1: i32) -> (i32, i32) {
    %c0_i32 = arith.constant 0 : i32
    %c0_i32_0 = arith.constant 0 : i32
    %c0_i32_1 = arith.constant 0 : i32
    return %c0_i32, %c0_i32_0 : i32, i32
  }
  func.func @transform_3(%arg0: i32, %arg1: i32) -> (i32, i32) {
    %c0_i32 = arith.constant 0 : i32
    %c0_i32_0 = arith.constant 0 : i32
    %c0_i32_1 = arith.constant 0 : i32
    return %c0_i32, %c0_i32_0 : i32, i32
  }
  func.func @transform_4(%arg0: i32, %arg1: i32) -> (i32, i32) {
    %c0_i32 = arith.constant 0 : i32
    %c0_i32_0 = arith.constant 0 : i32
    %c0_i32_1 = arith.constant 0 : i32
    return %c0_i32, %c0_i32_0 : i32, i32
  }
  func.func @transform_5(%arg0: i32, %arg1: i32) -> (i32, i32) {
    %c0_i32 = arith.constant 0 : i32
    %c0_i32_0 = arith.constant 0 : i32
    %c0_i32_1 = arith.constant 0 : i32
    return %c0_i32, %c0_i32_0 : i32, i32
  }
  func.func @transform_6(%arg0: i32, %arg1: i32) -> (i32, i32, i32) {
    %c0_i32 = arith.constant 0 : i32
    %c0_i32_0 = arith.constant 0 : i32
    return %arg0, %arg1, %c0_i32 : i32, i32, i32
  }
  func.func @transform_7(%arg0: i32, %arg1: i32) -> (i32, i32, i32) {
    %c0_i32 = arith.constant 0 : i32
    %c0_i32_0 = arith.constant 0 : i32
    %c0_i32_1 = arith.constant 0 : i32
    return %arg0, %c0_i32, %c0_i32_0 : i32, i32, i32
  }
}

</mosaic_0001>

<llo_original>
// kernel: tpu_custom_call.1
$region0: #{tpu_custom_call.1}
  #allocation0 [shape = 'u32[]', space=smem, size = 0x4, offset = 0x4, fixed_abs, tag = 'smem constant byte address 0x4 - core index']
  #allocation1 [shape = 'u32[144,128]{1,0:T(1,128)}', space=vmem, size = 0x12000, scoped, tag = 'internal scratch']
  #allocation2 [shape = 'f32[8,32]{1,0:T(8,128)}', space=vmem, size = 0x1000, scoped, tag = 'scratch operand']
  #allocation3 [shape = 'f32[8,32]{1,0:T(8,128)}', space=vmem, size = 0x1000, scoped, tag = 'scratch operand']
  %s0 = inlined_call_operand.hbm [shape: f32[2,8,32], index: 0, kind: input, shape index: {}]
  %s1 = inlined_call_operand.vmem [shape: f32[32,32], index: 1, kind: input, shape index: {}]
  %s2 = inlined_call_operand.vmem [shape: f32[32,16], index: 2, kind: input, shape index: {}]
  %s3 = inlined_call_operand.hbm [shape: f32[16,32], index: 3, kind: input, shape index: {}]
  %s4 = inlined_call_operand.hbm [shape: f32[16,32], index: 4, kind: input, shape index: {}]
  %s5 = inlined_call_operand.vmem [shape: f32[32,32], index: 5, kind: input, shape index: {}]
  %s6 = inlined_call_operand.hbm [shape: f32[2,8,32], index: 6, kind: output, shape index: {0}]
  %s7 = inlined_call_operand.hbm [shape: f32[2,8,16], index: 7, kind: output, shape index: {1}]
  %8 = xla_tuple %s6, %s7
  %s9 = sld [smem:[#allocation0]]
  $region81: #{tpu_custom_call.1} parent=0
    _
  %s11 = ssub.s32 1, %s9
  %s12 = scalar_select 0, %s11, %s9
  $region1: #{tpu_custom_call.1} parent=0
    #allocation4 [shape = 'u8[8192]{0}', space=vmem, size = 0x2000, scoped, tag = 'input window, operand 0']
    #allocation5 [shape = 's32[2]{0}', space=sflag, size = 0x8, scoped, tag = 'scoped memory for tpu_custom_call.1']
    #allocation6 [shape = 's32[2]{0}', space=sflag, size = 0x8, scoped, tag = 'scoped memory for tpu_custom_call.1']
    #allocation7 [shape = 'u8[8192]{0}', space=vmem, size = 0x2000, scoped, tag = 'input window, operand 3, single buffered']
    #allocation8 [shape = 's32[1]{0}', space=sflag, size = 0x4, scoped, tag = 'scoped memory for tpu_custom_call.1']
    #allocation9 [shape = 'u8[8192]{0}', space=vmem, size = 0x2000, scoped, tag = 'input window, operand 4, single buffered']
    #allocation10 [shape = 'u8[8192]{0}', space=vmem, size = 0x2000, scoped, tag = 'output window, operand 0']
    #allocation11 [shape = 'u8[8192]{0}', space=vmem, size = 0x2000, scoped, tag = 'output window, operand 1']
    #allocation12 [shape = 's32[2]{0}', space=sflag, size = 0x8, scoped, tag = 'scoped memory for tpu_custom_call.1']
    %13 = vsyncpa [#allocation5], 0
    %s14 = scalar_lea.sflag [#allocation5], 1
    %15 = vsyncpa %s14, 0
    %16 = vsyncpa [#allocation8], 0
    %17 = vsyncpa [#allocation6], 0
    %s18 = scalar_lea.sflag [#allocation6], 1
    %19 = vsyncpa %s18, 0
    %20 = vsyncpa [#allocation12], 0
    %s21 = scalar_lea.sflag [#allocation12], 1
    %22 = vsyncpa %s21, 0
    loop: start=0, step=1, limit=4
    $region2: #{tpu_custom_call.1} parent=1 // loop_pre_header
      _
    $region3: #{tpu_custom_call.1} parent=1 // loop_header
      %s24 = sphi 0, %s28
      %p25 = scmp.ge.s32.totalorder %s24, 4
      %s31 = sphi 0, %s43
      %s32 = sphi 0, %s39
      %s33 = sphi 0, %s31
      %s34 = sphi 0, %s32
      %s35 = sphi 0, %s33
      %s36 = sphi 0, %s34
      %s46 = sphi 0, %s48
      %s49 = sphi 0, %s46
      %s50 = sphi 0, %s49
      %s66 = sphi 0, %s50
      %s70 = sphi 0, %s70
      %s72 = sphi 0, %s70
      %s73 = sphi 0, %s72
      %s87 = sphi 0, %s73
      %s91 = sphi 0, %s91
      %s93 = sphi 0, %s91
      %s94 = sphi 0, %s93
      %s108 = sphi 0, %s94
      %s112 = sphi 0, %s112
      %s114 = sphi 0, %s112
      %s115 = sphi 0, %s114
      %s129 = sphi 0, %s115
      %s133 = sphi 0, %s133
      %s135 = sphi 0, %s133
      %s136 = sphi 0, %s135
      %s150 = sphi 0, %s136
      %s154 = sphi 0, %s154
      %s156 = sphi 0, %s154
      %s157 = sphi 0, %s156
      %s171 = sphi 0, %s157
      %s179 = sphi 0, %s181
      %s182 = sphi 0, %s179
      %s183 = sphi 0, %s182
      %s199 = sphi 0, %s183
      %s205 = sphi 0, %s207
      %s208 = sphi 0, %s205
      %s209 = sphi 0, %s208
      %s225 = sphi 0, %s209
    $region4: #{tpu_custom_call.1} parent=1 // loop_header_branch
      %27 = sbr.rel (%p25) target = $region8
    $region5: #{tpu_custom_call.1} parent=1 // loop_body
      %s29 = ssub.s32 %s24, 1
      %s30 = ssub.s32 %s24, 2
      %s37 = sadd.s32 1, %s32
      %p38 = scmp.ge.s32.totalorder %s37, 1
      %s39 = scalar_select %p38, 0, %s37
      %s40 = sadd.s32 1, %s31
      %s41 = scalar_select %p38, %s40, %s31
      %p42 = scmp.ge.s32.totalorder %s41, 2
      %s43 = scalar_select %p42, 0, %s41
      %s44 = ssub.s32 %s31, %s43
      %p45 = scmp.eq.s32.totalorder %s44, 0
      %s47 = sadd.s32 %s46, 1
      %s48 = scalar_select %p45, %s46, %s47
      %p51 = pneg %p45
      %p52 = scmp.eq.s32.totalorder %s24, 1
      %p53 = por %p51, %p52
      %p54 = scmp.ne.s32.totalorder %s46, %s49
      %p55 = scmp.eq.s32.totalorder %s24, 0
      %p56 = por %p54, %p55
      %p57 = scmp.ne.s32.totalorder %s46, %s49
      %p58 = scmp.eq.s32.totalorder %s29, 1
      %p59 = por %p57, %p58
      %p60 = scmp.ne.s32.totalorder %s49, %s50
      %p61 = scmp.eq.s32.totalorder %s29, 0
      %p62 = por %p60, %p61
      %p63 = scmp.ne.s32.totalorder %s49, %s50
      %p64 = scmp.eq.s32.totalorder %s30, 1
      %p65 = por %p63, %p64
      %p67 = scmp.ne.s32.totalorder %s50, %s66
      %p68 = scmp.eq.s32.totalorder %s30, 0
      %p69 = por %p67, %p68
      %s71 = sadd.s32 %s70, 1
      %p74 = scmp.eq.s32.totalorder %s24, 1
      %p75 = scmp.ne.s32.totalorder %s70, %s72
      %p76 = scmp.eq.s32.totalorder %s24, 0
      %p77 = por %p75, %p76
      %p78 = scmp.ne.s32.totalorder %s70, %s72
      %p79 = scmp.eq.s32.totalorder %s29, 1
      %p80 = por %p78, %p79
      %p81 = scmp.ne.s32.totalorder %s72, %s73
      %p82 = scmp.eq.s32.totalorder %s29, 0
      %p83 = por %p81, %p82
      %p84 = scmp.ne.s32.totalorder %s72, %s73
      %p85 = scmp.eq.s32.totalorder %s30, 1
      %p86 = por %p84, %p85
      %p88 = scmp.ne.s32.totalorder %s73, %s87
      %p89 = scmp.eq.s32.totalorder %s30, 0
      %p90 = por %p88, %p89
      %s92 = sadd.s32 %s91, 1
      %p95 = scmp.eq.s32.totalorder %s24, 1
      %p96 = scmp.ne.s32.totalorder %s91, %s93
      %p97 = scmp.eq.s32.totalorder %s24, 0
      %p98 = por %p96, %p97
      %p99 = scmp.ne.s32.totalorder %s91, %s93
      %p100 = scmp.eq.s32.totalorder %s29, 1
      %p101 = por %p99, %p100
      %p102 = scmp.ne.s32.totalorder %s93, %s94
      %p103 = scmp.eq.s32.totalorder %s29, 0
      %p104 = por %p102, %p103
      %p105 = scmp.ne.s32.totalorder %s93, %s94
      %p106 = scmp.eq.s32.totalorder %s30, 1
      %p107 = por %p105, %p106
      %p109 = scmp.ne.s32.totalorder %s94, %s108
      %p110 = scmp.eq.s32.totalorder %s30, 0
      %p111 = por %p109, %p110
      %s113 = sadd.s32 %s112, 1
      %p116 = scmp.eq.s32.totalorder %s24, 1
      %p117 = scmp.ne.s32.totalorder %s112, %s114
      %p118 = scmp.eq.s32.totalorder %s24, 0
      %p119 = por %p117, %p118
      %p120 = scmp.ne.s32.totalorder %s112, %s114
      %p121 = scmp.eq.s32.totalorder %s29, 1
      %p122 = por %p120, %p121
      %p123 = scmp.ne.s32.totalorder %s114, %s115
      %p124 = scmp.eq.s32.totalorder %s29, 0
      %p125 = por %p123, %p124
      %p126 = scmp.ne.s32.totalorder %s114, %s115
      %p127 = scmp.eq.s32.totalorder %s30, 1
      %p128 = por %p126, %p127
      %p130 = scmp.ne.s32.totalorder %s115, %s129
      %p131 = scmp.eq.s32.totalorder %s30, 0
      %p132 = por %p130, %p131
      %s134 = sadd.s32 %s133, 1
      %p137 = scmp.eq.s32.totalorder %s24, 1
      %p138 = scmp.ne.s32.totalorder %s133, %s135
      %p139 = scmp.eq.s32.totalorder %s24, 0
      %p140 = por %p138, %p139
      %p141 = scmp.ne.s32.totalorder %s133, %s135
      %p142 = scmp.eq.s32.totalorder %s29, 1
      %p143 = por %p141, %p142
      %p144 = scmp.ne.s32.totalorder %s135, %s136
      %p145 = scmp.eq.s32.totalorder %s29, 0
      %p146 = por %p144, %p145
      %p147 = scmp.ne.s32.totalorder %s135, %s136
      %p148 = scmp.eq.s32.totalorder %s30, 1
      %p149 = por %p147, %p148
      %p151 = scmp.ne.s32.totalorder %s136, %s150
      %p152 = scmp.eq.s32.totalorder %s30, 0
      %p153 = por %p151, %p152
      %s155 = sadd.s32 %s154, 1
      %p158 = scmp.eq.s32.totalorder %s24, 1
      %p159 = scmp.ne.s32.totalorder %s154, %s156
      %p160 = scmp.eq.s32.totalorder %s24, 0
      %p161 = por %p159, %p160
      %p162 = scmp.ne.s32.totalorder %s154, %s156
      %p163 = scmp.eq.s32.totalorder %s29, 1
      %p164 = por %p162, %p163
      %p165 = scmp.ne.s32.totalorder %s156, %s157
      %p166 = scmp.eq.s32.totalorder %s29, 0
      %p167 = por %p165, %p166
      %p168 = scmp.ne.s32.totalorder %s156, %s157
      %p169 = scmp.eq.s32.totalorder %s30, 1
      %p170 = por %p168, %p169
      %p172 = scmp.ne.s32.totalorder %s157, %s171
      %p173 = scmp.eq.s32.totalorder %s30, 0
      %p174 = por %p172, %p173
      %s175 = ssub.s32 %s31, %s43
      %s176 = ssub.s32 %s32, %s39
      %s177 = sor.u32 %s175, %s176
      %p178 = scmp.eq.s32.totalorder %s177, 0
      %s180 = sadd.s32 %s179, 1
      %s181 = scalar_select %p178, %s179, %s180
      %p184 = pneg %p178
      %p185 = scmp.eq.s32.totalorder %s24, 1
      %p186 = por %p184, %p185
      %p187 = scmp.ne.s32.totalorder %s179, %s182
      %p188 = scmp.eq.s32.totalorder %s24, 0
      %p189 = por %p187, %p188
      %p190 = scmp.ne.s32.totalorder %s179, %s182
      %p191 = scmp.eq.s32.totalorder %s29, 1
      %p192 = por %p190, %p191
      %p193 = scmp.ne.s32.totalorder %s182, %s183
      %p194 = scmp.eq.s32.totalorder %s29, 0
      %p195 = por %p193, %p194
      %p196 = scmp.ne.s32.totalorder %s182, %s183
      %p197 = scmp.eq.s32.totalorder %s30, 1
      %p198 = por %p196, %p197
      %p200 = scmp.ne.s32.totalorder %s183, %s199
      %p201 = scmp.eq.s32.totalorder %s30, 0
      %p202 = por %p200, %p201
      %s203 = ssub.s32 %s31, %s43
      %p204 = scmp.eq.s32.totalorder %s203, 0
      %s206 = sadd.s32 %s205, 1
      %s207 = scalar_select %p204, %s205, %s206
      %p210 = pneg %p204
      %p211 = scmp.eq.s32.totalorder %s24, 1
      %p212 = por %p210, %p211
      %p213 = scmp.ne.s32.totalorder %s205, %s208
      %p214 = scmp.eq.s32.totalorder %s24, 0
      %p215 = por %p213, %p214
      %p216 = scmp.ne.s32.totalorder %s205, %s208
      %p217 = scmp.eq.s32.totalorder %s29, 1
      %p218 = por %p216, %p217
      %p219 = scmp.ne.s32.totalorder %s208, %s209
      %p220 = scmp.eq.s32.totalorder %s29, 0
      %p221 = por %p219, %p220
      %p222 = scmp.ne.s32.totalorder %s208, %s209
      %p223 = scmp.eq.s32.totalorder %s30, 1
      %p224 = por %p222, %p223
      %p226 = scmp.ne.s32.totalorder %s209, %s225
      %p227 = scmp.eq.s32.totalorder %s30, 0
      %p228 = por %p226, %p227
      %p229 = scmp.le.s32.totalorder 1, %s24
      %p230 = scmp.lt.s32.totalorder %s24, 3
      %p231 = pnand %p229, %p230
      %p232 = pneg %p231
      // Predicated region
      $region9: #{tpu_custom_call.1} parent=5 // pred_check
        _
      $region10: #{tpu_custom_call.1} parent=5 // pred_check_branch
        %234 = sbr.rel (%p231) target = $region12
      $region11: #{tpu_custom_call.1} parent=5 // pred_region
        %s235 = ssub.s32 %s24, 1
        // Predicated region
        $region13: #{tpu_custom_call.1} parent=11 // pred_check
          %p236 = pneg %p83
        $region14: #{tpu_custom_call.1} parent=11 // pred_check_branch
          %238 = sbr.rel (%p236) target = $region16
        $region15: #{tpu_custom_call.1} parent=11 // pred_region
          _
        $region16: #{tpu_custom_call.1} parent=11 // pred_fallthru
          _
        // Predicated region
        $region17: #{tpu_custom_call.1} parent=11 // pred_check
          %p239 = pneg %p104
        $region18: #{tpu_custom_call.1} parent=11 // pred_check_branch
          %241 = sbr.rel (%p239) target = $region20
        $region19: #{tpu_custom_call.1} parent=11 // pred_region
          _
        $region20: #{tpu_custom_call.1} parent=11 // pred_fallthru
          _
        // Predicated region
        $region21: #{tpu_custom_call.1} parent=11 // pred_check
          %p242 = pneg %p125
        $region22: #{tpu_custom_call.1} parent=11 // pred_check_branch
          %244 = sbr.rel (%p242) target = $region24
        $region23: #{tpu_custom_call.1} parent=11 // pred_region
          %s246 = ssub.s32 256, 256
          %247 = vsyncadd [#allocation8], %s246
          %s248 = sshll.u32 [#allocation7], 4
          %s249 = int_to_ptr.vmem [resolvable:$true] %s248
          %254 = dma.hbm_to_vmem [thread:$0]  %s3, 256, %s249, [#allocation8], 128, 128, 8
        $region24: #{tpu_custom_call.1} parent=11 // pred_fallthru
          _
        // Predicated region
        $region25: #{tpu_custom_call.1} parent=11 // pred_check
          %p255 = pneg %p146
        $region26: #{tpu_custom_call.1} parent=11 // pred_check_branch
          %257 = sbr.rel (%p255) target = $region28
        $region27: #{tpu_custom_call.1} parent=11 // pred_region
          %s259 = ssub.s32 256, 256
          %260 = vsyncadd [#allocation8], %s259
          %s261 = sshll.u32 [#allocation9], 4
          %s262 = int_to_ptr.vmem [resolvable:$true] %s261
          %267 = dma.hbm_to_vmem [thread:$0]  %s4, 256, %s262, [#allocation8], 128, 128, 8
        $region28: #{tpu_custom_call.1} parent=11 // pred_fallthru
          _
        // Predicated region
        $region29: #{tpu_custom_call.1} parent=11 // pred_check
          %p268 = pneg %p167
        $region30: #{tpu_custom_call.1} parent=11 // pred_check_branch
          %270 = sbr.rel (%p268) target = $region32
        $region31: #{tpu_custom_call.1} parent=11 // pred_region
          _
        $region32: #{tpu_custom_call.1} parent=11 // pred_fallthru
          _
      $region12: #{tpu_custom_call.1} parent=5 // pred_fallthru
        _
      %p271 = scmp.lt.s32.totalorder %s24, 2
      // Predicated region
      $region33: #{tpu_custom_call.1} parent=5 // pred_check
        %p272 = pneg %p271
      $region34: #{tpu_custom_call.1} parent=5 // pred_check_branch
        %274 = sbr.rel (%p272) target = $region36
      $region35: #{tpu_custom_call.1} parent=5 // pred_region
        // Predicated region
        $region37: #{tpu_custom_call.1} parent=35 // pred_check
          %p275 = pneg %p56
        $region38: #{tpu_custom_call.1} parent=35 // pred_check_branch
          %277 = sbr.rel (%p275) target = $region40
        $region39: #{tpu_custom_call.1} parent=35 // pred_region
          %s278 = sand.u32 %s46, 1
          %s279 = scalar_lea.sflag [#allocation5], %s278
          %s280 = sand.u32 %s46, 1
          %s281 = smul.addr %s280, 8
          %s282 = scalar_lea.vmem [#allocation4], %s281
          %s284 = ssub.s32 128, 128
          %285 = vsyncadd %s279, %s284
          %s286 = smul.addr %s31, 128
          %s287 = scalar_lea.hbm %s0, %s286
          %s289 = sshll.u32 %s282, 4
          %s290 = int_to_ptr.vmem [resolvable:$true] %s289
          %292 = dma.hbm_to_vmem [thread:$0]  %s287, 128, %s290, %s279
        $region40: #{tpu_custom_call.1} parent=35 // pred_fallthru
          _
      $region36: #{tpu_custom_call.1} parent=5 // pred_fallthru
        _
      %p293 = scmp.le.s32.totalorder 1, %s24
      %p294 = scmp.lt.s32.totalorder %s24, 3
      %p295 = pnand %p293, %p294
      %p296 = pneg %p295
      // Predicated region
      $region41: #{tpu_custom_call.1} parent=5 // pred_check
        _
      $region42: #{tpu_custom_call.1} parent=5 // pred_check_branch
        %298 = sbr.rel (%p295) target = $region44
      $region43: #{tpu_custom_call.1} parent=5 // pred_region
        %s299 = ssub.s32 %s24, 1
        %s300 = sand.u32 %s49, 1
        %s301 = scalar_lea.sflag [#allocation5], %s300
        %s302 = sand.u32 %s49, 1
        %s303 = smul.addr %s302, 8
        %s304 = scalar_lea.vmem [#allocation4], %s303
        // Predicated region
        $region45: #{tpu_custom_call.1} parent=43 // pred_check
          %p305 = pneg %p62
        $region46: #{tpu_custom_call.1} parent=43 // pred_check_branch
          %307 = sbr.rel (%p305) target = $region48
        $region47: #{tpu_custom_call.1} parent=43 // pred_region
          %308 = dma.done %s301, 128
        $region48: #{tpu_custom_call.1} parent=43 // pred_fallthru
          _
        // Predicated region
        $region49: #{tpu_custom_call.1} parent=43 // pred_check
          %p309 = pneg %p125
        $region50: #{tpu_custom_call.1} parent=43 // pred_check_branch
          %311 = sbr.rel (%p309) target = $region52
        $region51: #{tpu_custom_call.1} parent=43 // pred_region
          %312 = dma.done [#allocation8], 256
        $region52: #{tpu_custom_call.1} parent=43 // pred_fallthru
          _
        // Predicated region
        $region53: #{tpu_custom_call.1} parent=43 // pred_check
          %p313 = pneg %p146
        $region54: #{tpu_custom_call.1} parent=43 // pred_check_branch
          %315 = sbr.rel (%p313) target = $region56
        $region55: #{tpu_custom_call.1} parent=43 // pred_region
          %316 = dma.done [#allocation8], 256
        $region56: #{tpu_custom_call.1} parent=43 // pred_fallthru
          _
        %s317 = sand.u32 %s49, 1
        %s318 = scalar_lea.sflag [#allocation5], %s317
        %s319 = sand.u32 %s49, 1
        %s320 = smul.addr %s319, 8
        %s321 = scalar_lea.vmem [#allocation4], %s320
        %p322 = pneg %p62
        %p323 = pneg %p59
        %p324 = pneg %p83
        %p325 = pneg %p80
        %p326 = pneg %p104
        %p327 = pneg %p101
        %p328 = pneg %p125
        %p329 = pneg %p122
        %p330 = pneg %p146
        %p331 = pneg %p143
        %p332 = pneg %p167
        %p333 = pneg %p164
        %p334 = pneg %p195
        %p335 = pneg %p192
        %s336 = sand.u32 %s182, 1
        %s337 = scalar_lea.sflag [#allocation6], %s336
        %s338 = sand.u32 %s182, 1
        %s339 = smul.addr %s338, 8
        %s340 = scalar_lea.vmem [#allocation10], %s339
        %p341 = pneg %p221
        %p342 = pneg %p218
        %s343 = sand.u32 %s208, 1
        %s344 = scalar_lea.sflag [#allocation12], %s343
        %s345 = sand.u32 %s208, 1
        %s346 = smul.addr %s345, 8
        %s347 = scalar_lea.vmem [#allocation11], %s346
        %p348 = scmp.eq.s32.totalorder %s34, 0
        // Predicated region
        $region57: #{tpu_custom_call.1} parent=43 // pred_check
          %p349 = pneg %p348
        $region58: #{tpu_custom_call.1} parent=43 // pred_check_branch
          %351 = sbr.rel (%p349) target = $region60
        $region59: #{tpu_custom_call.1} parent=43 // pred_region
          %v352 = vld [vmem:[%s304] sm:$0xff]
          %v353 = vld [vmem:[%s2] sm:$0xff]
          %v354 = vld [vmem:[%s2 + $0x8] sm:$0xff]
          %v355 = vld [vmem:[%s2 + $0x10] sm:$0xff]
          %v356 = vld [vmem:[%s2 + $0x18] sm:$0xff]
          %vm357 = vcmask 261120
          %v359 = vsel %vm357, %v352, 0
          %361 = vmatprep.subr.mxu0 0.0
          %362 = vmatpush1.msra.mxu0 %v353
          %363 = vmatprep.subr.mxu0 0.0
          %364 = vmatpush1.msra.mxu0 %v354
          %365 = vmatprep.subr.mxu0 0.0
          %366 = vmatpush1.msra.mxu0 %v355
          %367 = vmatprep.subr.mxu0 0.0
          %368 = vmatpush1.msra.mxu0 %v356
          %369 = vmatprep.subr.mxu0 0.0
          %370 = vmatpush1.msra.mxu0 0.0
          %371 = vmatprep.subr.mxu0 0.0
          %372 = vmatpush1.msra.mxu0 0.0
          %373 = vmatprep.subr.mxu0 0.0
          %374 = vmatpush1.msra.mxu0 0.0
          %375 = vmatprep.subr.mxu0 0.0
          %376 = vmatpush1.msra.mxu0 0.0
          %377 = vmatprep.subr.mxu0 0.0
          %378 = vmatpush1.msra.mxu0 0.0
          %379 = vmatprep.subr.mxu0 0.0
          %380 = vmatpush1.msra.mxu0 0.0
          %381 = vmatprep.subr.mxu0 0.0
          %382 = vmatpush1.msra.mxu0 0.0
          %383 = vmatprep.subr.mxu0 0.0
          %384 = vmatpush1.msra.mxu0 0.0
          %385 = vmatprep.subr.mxu0 0.0
          %386 = vmatpush1.msra.mxu0 0.0
          %387 = vmatprep.subr.mxu0 0.0
          %388 = vmatpush1.msra.mxu0 0.0
          %389 = vmatprep.subr.mxu0 0.0
          %390 = vmatpush1.msra.mxu0 0.0
          %391 = vmatprep.subr.mxu0 0.0
          %392 = vmatpush1.msra.mxu0 0.0
          %393 = vmatprep.subr.mxu0 0.0
          %394 = vmatpush1.msra.mxu0 0.0
          %395 = vmatprep.subr.mxu0 0.0
          %396 = vmatpush1.msra.mxu0 0.0
          %397 = vmatprep.subr.mxu0 0.0
          %398 = vmatpush1.msra.mxu0 0.0
          %399 = vmatprep.subr.mxu0 0.0
          %400 = vmatpush1.msra.mxu0 0.0
          %401 = vmatprep.subr.mxu0 0.0
          %402 = vmatpush1.msra.mxu0 0.0
          %403 = vmatprep.subr.mxu0 0.0
          %404 = vmatpush1.msra.mxu0 0.0
          %405 = vmatprep.subr.mxu0 0.0
          %406 = vmatpush1.msra.mxu0 0.0
          %407 = vmatprep.subr.mxu0 0.0
          %408 = vmatpush1.msra.mxu0 0.0
          %409 = vmatprep.subr.mxu0 0.0
          %410 = vmatpush1.msra.mxu0 0.0
          %411 = vmatprep.subr.mxu0 0.0
          %412 = vmatpush1.msra.mxu0 0.0
          %413 = vmatprep.subr.mxu0 0.0
          %414 = vmatpush1.msra.mxu0 0.0
          %415 = vmatprep.subr.mxu0 0.0
          %416 = vmatpush1.msra.mxu0 0.0
          %417 = vmatprep.subr.mxu0 0.0
          %418 = vmatpush1.msra.mxu0 0.0
          %419 = vmatprep.subr.mxu0 0.0
          %420 = vmatpush1.msra.mxu0 0.0
          %421 = vmatprep.subr.mxu0 0.0
          %422 = vmatpush1.msra.mxu0 0.0
          %423 = vmatprep.subr.mxu0 0.0
          %424 = vmatpush1.msra.mxu0 0.0
          %425 = vmatprep.mubr.f32.mxu0 0.0
          %426 = vmatmul.mubr.f32.gmra.mrb[0].mxu0 %v359
          %v427 = vpop.f32.mrb[0].mxu0
          %v428 = vadd.f32 0.0, %v427
          %v429 = vpop.f32.mrb[0].mxu0
          %430 = vdwg.mxu0
          %vm431 = vcmask 130048
          %432 = vst.msk [vmem:[%s347] sm:$0xff] %vm431, %v428
          %v433 = vld [vmem:[#allocation7] sm:$0xff]
          %v434 = vld [vmem:[#allocation7 + $0x8] sm:$0xff]
          %v436 = vsel %vm431, %v428, 0
          %438 = vmatprep.subr.mxu0 0.0
          %439 = vmatpush1.msra.mxu0 %v433
          %440 = vmatprep.subr.mxu0 0.0
          %441 = vmatpush1.msra.mxu0 %v434
          %442 = vmatprep.subr.mxu0 0.0
          %443 = vmatpush1.msra.mxu0 0.0
          %444 = vmatprep.subr.mxu0 0.0
          %445 = vmatpush1.msra.mxu0 0.0
          %446 = vmatprep.subr.mxu0 0.0
          %447 = vmatpush1.msra.mxu0 0.0
          %448 = vmatprep.subr.mxu0 0.0
          %449 = vmatpush1.msra.mxu0 0.0
          %450 = vmatprep.subr.mxu0 0.0
          %451 = vmatpush1.msra.mxu0 0.0
          %452 = vmatprep.subr.mxu0 0.0
          %453 = vmatpush1.msra.mxu0 0.0
          %454 = vmatprep.subr.mxu0 0.0
          %455 = vmatpush1.msra.mxu0 0.0
          %456 = vmatprep.subr.mxu0 0.0
          %457 = vmatpush1.msra.mxu0 0.0
          %458 = vmatprep.subr.mxu0 0.0
          %459 = vmatpush1.msra.mxu0 0.0
          %460 = vmatprep.subr.mxu0 0.0
          %461 = vmatpush1.msra.mxu0 0.0
          %462 = vmatprep.subr.mxu0 0.0
          %463 = vmatpush1.msra.mxu0 0.0
          %464 = vmatprep.subr.mxu0 0.0
          %465 = vmatpush1.msra.mxu0 0.0
          %466 = vmatprep.subr.mxu0 0.0
          %467 = vmatpush1.msra.mxu0 0.0
          %468 = vmatprep.subr.mxu0 0.0
          %469 = vmatpush1.msra.mxu0 0.0
          %470 = vmatprep.subr.mxu0 0.0
          %471 = vmatpush1.msra.mxu0 0.0
          %472 = vmatprep.subr.mxu0 0.0
          %473 = vmatpush1.msra.mxu0 0.0
          %474 = vmatprep.subr.mxu0 0.0
          %475 = vmatpush1.msra.mxu0 0.0
          %476 = vmatprep.subr.mxu0 0.0
          %477 = vmatpush1.msra.mxu0 0.0
          %478 = vmatprep.subr.mxu0 0.0
          %479 = vmatpush1.msra.mxu0 0.0
          %480 = vmatprep.subr.mxu0 0.0
          %481 = vmatpush1.msra.mxu0 0.0
          %482 = vmatprep.subr.mxu0 0.0
          %483 = vmatpush1.msra.mxu0 0.0
          %484 = vmatprep.subr.mxu0 0.0
          %485 = vmatpush1.msra.mxu0 0.0
          %486 = vmatprep.subr.mxu0 0.0
          %487 = vmatpush1.msra.mxu0 0.0
          %488 = vmatprep.subr.mxu0 0.0
          %489 = vmatpush1.msra.mxu0 0.0
          %490 = vmatprep.subr.mxu0 0.0
          %491 = vmatpush1.msra.mxu0 0.0
          %492 = vmatprep.subr.mxu0 0.0
          %493 = vmatpush1.msra.mxu0 0.0
          %494 = vmatprep.subr.mxu0 0.0
          %495 = vmatpush1.msra.mxu0 0.0
          %496 = vmatprep.subr.mxu0 0.0
          %497 = vmatpush1.msra.mxu0 0.0
          %498 = vmatprep.subr.mxu0 0.0
          %499 = vmatpush1.msra.mxu0 0.0
          %500 = vmatprep.subr.mxu0 0.0
          %501 = vmatpush1.msra.mxu0 0.0
          %502 = vmatprep.mubr.f32.mxu0 0.0
          %503 = vmatmul.mubr.f32.gmra.mrb[0].mxu0 %v436
          %v504 = vpop.f32.mrb[0].mxu0
          %v505 = vadd.f32 0.0, %v504
          %v506 = vpop.f32.mrb[0].mxu0
          %507 = vdwg.mxu0
          %508 = vst.msk [vmem:[#allocation2] sm:$0xff] %vm357, %v505
          %v509 = vld [vmem:[#allocation9] sm:$0xff]
          %v510 = vld [vmem:[#allocation9 + $0x8] sm:$0xff]
          %511 = vmatprep.subr.mxu0 0.0
          %512 = vmatpush1.msra.mxu0 %v509
          %513 = vmatprep.subr.mxu0 0.0
          %514 = vmatpush1.msra.mxu0 %v510
          %515 = vmatprep.subr.mxu0 0.0
          %516 = vmatpush1.msra.mxu0 0.0
          %517 = vmatprep.subr.mxu0 0.0
          %518 = vmatpush1.msra.mxu0 0.0
          %519 = vmatprep.subr.mxu0 0.0
          %520 = vmatpush1.msra.mxu0 0.0
          %521 = vmatprep.subr.mxu0 0.0
          %522 = vmatpush1.msra.mxu0 0.0
          %523 = vmatprep.subr.mxu0 0.0
          %524 = vmatpush1.msra.mxu0 0.0
          %525 = vmatprep.subr.mxu0 0.0
          %526 = vmatpush1.msra.mxu0 0.0
          %527 = vmatprep.subr.mxu0 0.0
          %528 = vmatpush1.msra.mxu0 0.0
          %529 = vmatprep.subr.mxu0 0.0
          %530 = vmatpush1.msra.mxu0 0.0
          %531 = vmatprep.subr.mxu0 0.0
          %532 = vmatpush1.msra.mxu0 0.0
          %533 = vmatprep.subr.mxu0 0.0
          %534 = vmatpush1.msra.mxu0 0.0
          %535 = vmatprep.subr.mxu0 0.0
          %536 = vmatpush1.msra.mxu0 0.0
          %537 = vmatprep.subr.mxu0 0.0
          %538 = vmatpush1.msra.mxu0 0.0
          %539 = vmatprep.subr.mxu0 0.0
          %540 = vmatpush1.msra.mxu0 0.0
          %541 = vmatprep.subr.mxu0 0.0
          %542 = vmatpush1.msra.mxu0 0.0
          %543 = vmatprep.subr.mxu0 0.0
          %544 = vmatpush1.msra.mxu0 0.0
          %545 = vmatprep.subr.mxu0 0.0
          %546 = vmatpush1.msra.mxu0 0.0
          %547 = vmatprep.subr.mxu0 0.0
          %548 = vmatpush1.msra.mxu0 0.0
          %549 = vmatprep.subr.mxu0 0.0
          %550 = vmatpush1.msra.mxu0 0.0
          %551 = vmatprep.subr.mxu0 0.0
          %552 = vmatpush1.msra.mxu0 0.0
          %553 = vmatprep.subr.mxu0 0.0
          %554 = vmatpush1.msra.mxu0 0.0
          %555 = vmatprep.subr.mxu0 0.0
          %556 = vmatpush1.msra.mxu0 0.0
          %557 = vmatprep.subr.mxu0 0.0
          %558 = vmatpush1.msra.mxu0 0.0
          %559 = vmatprep.subr.mxu0 0.0
          %560 = vmatpush1.msra.mxu0 0.0
          %561 = vmatprep.subr.mxu0 0.0
          %562 = vmatpush1.msra.mxu0 0.0
          %563 = vmatprep.subr.mxu0 0.0
          %564 = vmatpush1.msra.mxu0 0.0
          %565 = vmatprep.subr.mxu0 0.0
          %566 = vmatpush1.msra.mxu0 0.0
          %567 = vmatprep.subr.mxu0 0.0
          %568 = vmatpush1.msra.mxu0 0.0
          %569 = vmatprep.subr.mxu0 0.0
          %570 = vmatpush1.msra.mxu0 0.0
          %571 = vmatprep.subr.mxu0 0.0
          %572 = vmatpush1.msra.mxu0 0.0
          %573 = vmatprep.subr.mxu0 0.0
          %574 = vmatpush1.msra.mxu0 0.0
          %575 = vmatprep.mubr.f32.mxu0 0.0
          %576 = vmatmul.mubr.f32.gmra.mrb[0].mxu0 %v436
          %v577 = vpop.f32.mrb[0].mxu0
          %v578 = vadd.f32 0.0, %v577
          %v579 = vpop.f32.mrb[0].mxu0
          %580 = vdwg.mxu0
          %581 = vst.msk [vmem:[#allocation3] sm:$0xff] %vm357, %v578
        $region60: #{tpu_custom_call.1} parent=43 // pred_fallthru
          _
        %s582 = smul.u32 %s34, 8
        %s583 = scalar_lea.vmem %s304, %s582 [#allocation4]
        %v584 = vld [vmem:[%s583] sm:$0xff]
        %v585 = vld [vmem:[%s1] sm:$0xff]
        %v586 = vld [vmem:[%s1 + $0x8] sm:$0xff]
        %v587 = vld [vmem:[%s1 + $0x10] sm:$0xff]
        %v588 = vld [vmem:[%s1 + $0x18] sm:$0xff]
        %vm589 = vcmask 261120
        %v591 = vsel %vm589, %v584, 0
        %593 = vmatprep.subr.mxu0 0.0
        %594 = vmatpush1.msra.mxu0 %v585
        %595 = vmatprep.subr.mxu0 0.0
        %596 = vmatpush1.msra.mxu0 %v586
        %597 = vmatprep.subr.mxu0 0.0
        %598 = vmatpush1.msra.mxu0 %v587
        %599 = vmatprep.subr.mxu0 0.0
        %600 = vmatpush1.msra.mxu0 %v588
        %601 = vmatprep.subr.mxu0 0.0
        %602 = vmatpush1.msra.mxu0 0.0
        %603 = vmatprep.subr.mxu0 0.0
        %604 = vmatpush1.msra.mxu0 0.0
        %605 = vmatprep.subr.mxu0 0.0
        %606 = vmatpush1.msra.mxu0 0.0
        %607 = vmatprep.subr.mxu0 0.0
        %608 = vmatpush1.msra.mxu0 0.0
        %609 = vmatprep.subr.mxu0 0.0
        %610 = vmatpush1.msra.mxu0 0.0
        %611 = vmatprep.subr.mxu0 0.0
        %612 = vmatpush1.msra.mxu0 0.0
        %613 = vmatprep.subr.mxu0 0.0
        %614 = vmatpush1.msra.mxu0 0.0
        %615 = vmatprep.subr.mxu0 0.0
        %616 = vmatpush1.msra.mxu0 0.0
        %617 = vmatprep.subr.mxu0 0.0
        %618 = vmatpush1.msra.mxu0 0.0
        %619 = vmatprep.subr.mxu0 0.0
        %620 = vmatpush1.msra.mxu0 0.0
        %621 = vmatprep.subr.mxu0 0.0
        %622 = vmatpush1.msra.mxu0 0.0
        %623 = vmatprep.subr.mxu0 0.0
        %624 = vmatpush1.msra.mxu0 0.0
        %625 = vmatprep.subr.mxu0 0.0
        %626 = vmatpush1.msra.mxu0 0.0
        %627 = vmatprep.subr.mxu0 0.0
        %628 = vmatpush1.msra.mxu0 0.0
        %629 = vmatprep.subr.mxu0 0.0
        %630 = vmatpush1.msra.mxu0 0.0
        %631 = vmatprep.subr.mxu0 0.0
        %632 = vmatpush1.msra.mxu0 0.0
        %633 = vmatprep.subr.mxu0 0.0
        %634 = vmatpush1.msra.mxu0 0.0
        %635 = vmatprep.subr.mxu0 0.0
        %636 = vmatpush1.msra.mxu0 0.0
        %637 = vmatprep.subr.mxu0 0.0
        %638 = vmatpush1.msra.mxu0 0.0
        %639 = vmatprep.subr.mxu0 0.0
        %640 = vmatpush1.msra.mxu0 0.0
        %641 = vmatprep.subr.mxu0 0.0
        %642 = vmatpush1.msra.mxu0 0.0
        %643 = vmatprep.subr.mxu0 0.0
        %644 = vmatpush1.msra.mxu0 0.0
        %645 = vmatprep.subr.mxu0 0.0
        %646 = vmatpush1.msra.mxu0 0.0
        %647 = vmatprep.subr.mxu0 0.0
        %648 = vmatpush1.msra.mxu0 0.0
        %649 = vmatprep.subr.mxu0 0.0
        %650 = vmatpush1.msra.mxu0 0.0
        %651 = vmatprep.subr.mxu0 0.0
        %652 = vmatpush1.msra.mxu0 0.0
        %653 = vmatprep.subr.mxu0 0.0
        %654 = vmatpush1.msra.mxu0 0.0
        %655 = vmatprep.subr.mxu0 0.0
        %656 = vmatpush1.msra.mxu0 0.0
        %657 = vmatprep.mubr.f32.mxu0 0.0
        %658 = vmatmul.mubr.f32.gmra.mrb[0].mxu0 %v591
        %v659 = vpop.f32.mrb[0].mxu0
        %v660 = vadd.f32 0.0, %v659
        %v661 = vpop.f32.mrb[0].mxu0
        %662 = vdwg.mxu0
        %v663 = vld [vmem:[#allocation2] sm:$0xff]
        %v664 = vld [vmem:[#allocation3] sm:$0xff]
        %v665 = vld [vmem:[%s5] sm:$0xff]
        %vm666 = vcmask 64512
        %v668 = vsel %vm666, %v660, 0
        %v671 = vsel %vm666, %v663, 0
        %673 = vmatprep.subr.mxu0 0.0
        %674 = vmatpush1.xpose.msra.mxu0 %v671
        %675 = vmatprep.subr.mxu0 0.0
        %676 = vmatpush1.xpose.msra.mxu0 0.0
        %677 = vmatprep.subr.mxu0 0.0
        %678 = vmatpush1.xpose.msra.mxu0 0.0
        %679 = vmatprep.subr.mxu0 0.0
        %680 = vmatpush1.xpose.msra.mxu0 0.0
        %681 = vmatprep.subr.mxu0 0.0
        %682 = vmatpush1.xpose.msra.mxu0 0.0
        %683 = vmatprep.subr.mxu0 0.0
        %684 = vmatpush1.xpose.msra.mxu0 0.0
        %685 = vmatprep.subr.mxu0 0.0
        %686 = vmatpush1.xpose.msra.mxu0 0.0
        %687 = vmatprep.subr.mxu0 0.0
        %688 = vmatpush1.xpose.msra.mxu0 0.0
        %689 = vmatprep.subr.mxu0 0.0
        %690 = vmatpush1.xpose.msra.mxu0 0.0
        %691 = vmatprep.subr.mxu0 0.0
        %692 = vmatpush1.xpose.msra.mxu0 0.0
        %693 = vmatprep.subr.mxu0 0.0
        %694 = vmatpush1.xpose.msra.mxu0 0.0
        %695 = vmatprep.subr.mxu0 0.0
        %696 = vmatpush1.xpose.msra.mxu0 0.0
        %697 = vmatprep.subr.mxu0 0.0
        %698 = vmatpush1.xpose.msra.mxu0 0.0
        %699 = vmatprep.subr.mxu0 0.0
        %700 = vmatpush1.xpose.msra.mxu0 0.0
        %701 = vmatprep.subr.mxu0 0.0
        %702 = vmatpush1.xpose.msra.mxu0 0.0
        %703 = vmatprep.subr.mxu0 0.0
        %704 = vmatpush1.xpose.msra.mxu0 0.0
        %705 = vmatprep.subr.mxu0 0.0
        %706 = vmatpush1.xpose.msra.mxu0 0.0
        %707 = vmatprep.subr.mxu0 0.0
        %708 = vmatpush1.xpose.msra.mxu0 0.0
        %709 = vmatprep.subr.mxu0 0.0
        %710 = vmatpush1.xpose.msra.mxu0 0.0
        %711 = vmatprep.subr.mxu0 0.0
        %712 = vmatpush1.xpose.msra.mxu0 0.0
        %713 = vmatprep.subr.mxu0 0.0
        %714 = vmatpush1.xpose.msra.mxu0 0.0
        %715 = vmatprep.subr.mxu0 0.0
        %716 = vmatpush1.xpose.msra.mxu0 0.0
        %717 = vmatprep.subr.mxu0 0.0
        %718 = vmatpush1.xpose.msra.mxu0 0.0
        %719 = vmatprep.subr.mxu0 0.0
        %720 = vmatpush1.xpose.msra.mxu0 0.0
        %721 = vmatprep.subr.mxu0 0.0
        %722 = vmatpush1.xpose.msra.mxu0 0.0
        %723 = vmatprep.subr.mxu0 0.0
        %724 = vmatpush1.xpose.msra.mxu0 0.0
        %725 = vmatprep.subr.mxu0 0.0
        %726 = vmatpush1.xpose.msra.mxu0 0.0
        %727 = vmatprep.subr.mxu0 0.0
        %728 = vmatpush1.xpose.msra.mxu0 0.0
        %729 = vmatprep.subr.mxu0 0.0
        %730 = vmatpush1.xpose.msra.mxu0 0.0
        %731 = vmatprep.subr.mxu0 0.0
        %732 = vmatpush1.xpose.msra.mxu0 0.0
        %733 = vmatprep.subr.mxu0 0.0
        %734 = vmatpush1.xpose.msra.mxu0 0.0
        %735 = vmatprep.subr.mxu0 0.0
        %736 = vmatpush1.xpose.msra.mxu0 0.0
        %737 = vmatprep.mubr.f32.mxu0 0.0
        %738 = vmatmul.mubr.f32.gmra.mrb[0].mxu0 %v668
        %v739 = vpop.f32.mrb[0].mxu0
        %v740 = vadd.f32 0.0, %v739
        %v741 = vpop.f32.mrb[0].mxu0
        %742 = vdwg.mxu0
        %vm743 = vcmp.ne.f32.partialorder %v740, %v740
        %v744 = vsel %vm743, 0.0, %v740
        %vm745 = vcmp.eq.f32.partialorder %v744, inf
        %v746 = vsel %vm745, 10.0, %v744
        %vm747 = vcmp.eq.f32.partialorder %v746, -inf
        %v748 = vsel %vm747, -10.0, %v746
        %v749 = vsel %vm666, %v748, -inf
        %750 = vmax.xlane.f32.xlu0 %v749
        %v751 = vpop.xlane.xlu0 %750
        %v752 = vsub.f32 %v748, %v751
        %v753 = vmul.f32 %v752, 1.442695
        %v754 = vpow.pop %v753
        %v755 = vsel %vm666, %v754, 0.0
        %756 = vadd.xlane.f32.xlu0 %v755
        %v757 = vpop.xlane.xlu0 %756
        %v758 = vrcp.pop %v757
        %v759 = vmul.f32 %v754, %v758
        %v761 = vsel %vm666, %v759, 0
        %763 = vmatprep.subr.mxu0 0.0
        %764 = vmatpush1.msra.mxu0 %v664
        %765 = vmatprep.subr.mxu0 0.0
        %766 = vmatpush1.msra.mxu0 0.0
        %767 = vmatprep.subr.mxu0 0.0
        %768 = vmatpush1.msra.mxu0 0.0
        %769 = vmatprep.subr.mxu0 0.0
        %770 = vmatpush1.msra.mxu0 0.0
        %771 = vmatprep.subr.mxu0 0.0
        %772 = vmatpush1.msra.mxu0 0.0
        %773 = vmatprep.subr.mxu0 0.0
        %774 = vmatpush1.msra.mxu0 0.0
        %775 = vmatprep.subr.mxu0 0.0
        %776 = vmatpush1.msra.mxu0 0.0
        %777 = vmatprep.subr.mxu0 0.0
        %778 = vmatpush1.msra.mxu0 0.0
        %779 = vmatprep.subr.mxu0 0.0
        %780 = vmatpush1.msra.mxu0 0.0
        %781 = vmatprep.subr.mxu0 0.0
        %782 = vmatpush1.msra.mxu0 0.0
        %783 = vmatprep.subr.mxu0 0.0
        %784 = vmatpush1.msra.mxu0 0.0
        %785 = vmatprep.subr.mxu0 0.0
        %786 = vmatpush1.msra.mxu0 0.0
        %787 = vmatprep.subr.mxu0 0.0
        %788 = vmatpush1.msra.mxu0 0.0
        %789 = vmatprep.subr.mxu0 0.0
        %790 = vmatpush1.msra.mxu0 0.0
        %791 = vmatprep.subr.mxu0 0.0
        %792 = vmatpush1.msra.mxu0 0.0
        %793 = vmatprep.subr.mxu0 0.0
        %794 = vmatpush1.msra.mxu0 0.0
        %795 = vmatprep.subr.mxu0 0.0
        %796 = vmatpush1.msra.mxu0 0.0
        %797 = vmatprep.subr.mxu0 0.0
        %798 = vmatpush1.msra.mxu0 0.0
        %799 = vmatprep.subr.mxu0 0.0
        %800 = vmatpush1.msra.mxu0 0.0
        %801 = vmatprep.subr.mxu0 0.0
        %802 = vmatpush1.msra.mxu0 0.0
        %803 = vmatprep.subr.mxu0 0.0
        %804 = vmatpush1.msra.mxu0 0.0
        %805 = vmatprep.subr.mxu0 0.0
        %806 = vmatpush1.msra.mxu0 0.0
        %807 = vmatprep.subr.mxu0 0.0
        %808 = vmatpush1.msra.mxu0 0.0
        %809 = vmatprep.subr.mxu0 0.0
        %810 = vmatpush1.msra.mxu0 0.0
        %811 = vmatprep.subr.mxu0 0.0
        %812 = vmatpush1.msra.mxu0 0.0
        %813 = vmatprep.subr.mxu0 0.0
        %814 = vmatpush1.msra.mxu0 0.0
        %815 = vmatprep.subr.mxu0 0.0
        %816 = vmatpush1.msra.mxu0 0.0
        %817 = vmatprep.subr.mxu0 0.0
        %818 = vmatpush1.msra.mxu0 0.0
        %819 = vmatprep.subr.mxu0 0.0
        %820 = vmatpush1.msra.mxu0 0.0
        %821 = vmatprep.subr.mxu0 0.0
        %822 = vmatpush1.msra.mxu0 0.0
        %823 = vmatprep.subr.mxu0 0.0
        %824 = vmatpush1.msra.mxu0 0.0
        %825 = vmatprep.subr.mxu0 0.0
        %826 = vmatpush1.msra.mxu0 0.0
        %827 = vmatprep.mubr.f32.mxu0 0.0
        %828 = vmatmul.mubr.f32.gmra.mrb[0].mxu0 %v761
        %v829 = vpop.f32.mrb[0].mxu0
        %v830 = vadd.f32 0.0, %v829
        %v831 = vpop.f32.mrb[0].mxu0
        %832 = vdwg.mxu0
        %v833 = vld [vmem:[%s5 + $0x8] sm:$0xff]
        %834 = vrot.lane.b32.xlu0 %v660, 120
        %v835 = vpop.permute.xlu0 %834
        %836 = vrot.lane.b32.xlu0 %v663, 120
        %v837 = vpop.permute.xlu0 %836
        %v838 = vsel %vm666, %v835, 0
        %v840 = vsel %vm666, %v837, 0
        %842 = vmatprep.subr.mxu0 0.0
        %843 = vmatpush1.xpose.msra.mxu0 %v840
        %844 = vmatprep.subr.mxu0 0.0
        %845 = vmatpush1.xpose.msra.mxu0 0.0
        %846 = vmatprep.subr.mxu0 0.0
        %847 = vmatpush1.xpose.msra.mxu0 0.0
        %848 = vmatprep.subr.mxu0 0.0
        %849 = vmatpush1.xpose.msra.mxu0 0.0
        %850 = vmatprep.subr.mxu0 0.0
        %851 = vmatpush1.xpose.msra.mxu0 0.0
        %852 = vmatprep.subr.mxu0 0.0
        %853 = vmatpush1.xpose.msra.mxu0 0.0
        %854 = vmatprep.subr.mxu0 0.0
        %855 = vmatpush1.xpose.msra.mxu0 0.0
        %856 = vmatprep.subr.mxu0 0.0
        %857 = vmatpush1.xpose.msra.mxu0 0.0
        %858 = vmatprep.subr.mxu0 0.0
        %859 = vmatpush1.xpose.msra.mxu0 0.0
        %860 = vmatprep.subr.mxu0 0.0
        %861 = vmatpush1.xpose.msra.mxu0 0.0
        %862 = vmatprep.subr.mxu0 0.0
        %863 = vmatpush1.xpose.msra.mxu0 0.0
        %864 = vmatprep.subr.mxu0 0.0
        %865 = vmatpush1.xpose.msra.mxu0 0.0
        %866 = vmatprep.subr.mxu0 0.0
        %867 = vmatpush1.xpose.msra.mxu0 0.0
        %868 = vmatprep.subr.mxu0 0.0
        %869 = vmatpush1.xpose.msra.mxu0 0.0
        %870 = vmatprep.subr.mxu0 0.0
        %871 = vmatpush1.xpose.msra.mxu0 0.0
        %872 = vmatprep.subr.mxu0 0.0
        %873 = vmatpush1.xpose.msra.mxu0 0.0
        %874 = vmatprep.subr.mxu0 0.0
        %875 = vmatpush1.xpose.msra.mxu0 0.0
        %876 = vmatprep.subr.mxu0 0.0
        %877 = vmatpush1.xpose.msra.mxu0 0.0
        %878 = vmatprep.subr.mxu0 0.0
        %879 = vmatpush1.xpose.msra.mxu0 0.0
        %880 = vmatprep.subr.mxu0 0.0
        %881 = vmatpush1.xpose.msra.mxu0 0.0
        %882 = vmatprep.subr.mxu0 0.0
        %883 = vmatpush1.xpose.msra.mxu0 0.0
        %884 = vmatprep.subr.mxu0 0.0
        %885 = vmatpush1.xpose.msra.mxu0 0.0
        %886 = vmatprep.subr.mxu0 0.0
        %887 = vmatpush1.xpose.msra.mxu0 0.0
        %888 = vmatprep.subr.mxu0 0.0
        %889 = vmatpush1.xpose.msra.mxu0 0.0
        %890 = vmatprep.subr.mxu0 0.0
        %891 = vmatpush1.xpose.msra.mxu0 0.0
        %892 = vmatprep.subr.mxu0 0.0
        %893 = vmatpush1.xpose.msra.mxu0 0.0
        %894 = vmatprep.subr.mxu0 0.0
        %895 = vmatpush1.xpose.msra.mxu0 0.0
        %896 = vmatprep.subr.mxu0 0.0
        %897 = vmatpush1.xpose.msra.mxu0 0.0
        %898 = vmatprep.subr.mxu0 0.0
        %899 = vmatpush1.xpose.msra.mxu0 0.0
        %900 = vmatprep.subr.mxu0 0.0
        %901 = vmatpush1.xpose.msra.mxu0 0.0
        %902 = vmatprep.subr.mxu0 0.0
        %903 = vmatpush1.xpose.msra.mxu0 0.0
        %904 = vmatprep.subr.mxu0 0.0
        %905 = vmatpush1.xpose.msra.mxu0 0.0
        %906 = vmatprep.mubr.f32.mxu0 0.0
        %907 = vmatmul.mubr.f32.gmra.mrb[0].mxu0 %v838
        %v908 = vpop.f32.mrb[0].mxu0
        %v909 = vadd.f32 0.0, %v908
        %v910 = vpop.f32.mrb[0].mxu0
        %911 = vdwg.mxu0
        %vm912 = vcmp.ne.f32.partialorder %v909, %v909
        %v913 = vsel %vm912, 0.0, %v909
        %vm914 = vcmp.eq.f32.partialorder %v913, inf
        %v915 = vsel %vm914, 10.0, %v913
        %vm916 = vcmp.eq.f32.partialorder %v915, -inf
        %v917 = vsel %vm916, -10.0, %v915
        %v918 = vsel %vm666, %v917, -inf
        %919 = vmax.xlane.f32.xlu0 %v918
        %v920 = vpop.xlane.xlu0 %919
        %v921 = vsub.f32 %v917, %v920
        %v922 = vmul.f32 %v921, 1.442695
        %v923 = vpow.pop %v922
        %v924 = vsel %vm666, %v923, 0.0
        %925 = vadd.xlane.f32.xlu0 %v924
        %v926 = vpop.xlane.xlu0 %925
        %v927 = vrcp.pop %v926
        %v928 = vmul.f32 %v923, %v927
        %930 = vrot.lane.b32.xlu0 %v664, 120
        %v931 = vpop.permute.xlu0 %930
        %v934 = vsel %vm666, %v928, 0
        %936 = vmatprep.subr.mxu0 0.0
        %937 = vmatpush1.msra.mxu0 %v931
        %938 = vmatprep.subr.mxu0 0.0
        %939 = vmatpush1.msra.mxu0 0.0
        %940 = vmatprep.subr.mxu0 0.0
        %941 = vmatpush1.msra.mxu0 0.0
        %942 = vmatprep.subr.mxu0 0.0
        %943 = vmatpush1.msra.mxu0 0.0
        %944 = vmatprep.subr.mxu0 0.0
        %945 = vmatpush1.msra.mxu0 0.0
        %946 = vmatprep.subr.mxu0 0.0
        %947 = vmatpush1.msra.mxu0 0.0
        %948 = vmatprep.subr.mxu0 0.0
        %949 = vmatpush1.msra.mxu0 0.0
        %950 = vmatprep.subr.mxu0 0.0
        %951 = vmatpush1.msra.mxu0 0.0
        %952 = vmatprep.subr.mxu0 0.0
        %953 = vmatpush1.msra.mxu0 0.0
        %954 = vmatprep.subr.mxu0 0.0
        %955 = vmatpush1.msra.mxu0 0.0
        %956 = vmatprep.subr.mxu0 0.0
        %957 = vmatpush1.msra.mxu0 0.0
        %958 = vmatprep.subr.mxu0 0.0
        %959 = vmatpush1.msra.mxu0 0.0
        %960 = vmatprep.subr.mxu0 0.0
        %961 = vmatpush1.msra.mxu0 0.0
        %962 = vmatprep.subr.mxu0 0.0
        %963 = vmatpush1.msra.mxu0 0.0
        %964 = vmatprep.subr.mxu0 0.0
        %965 = vmatpush1.msra.mxu0 0.0
        %966 = vmatprep.subr.mxu0 0.0
        %967 = vmatpush1.msra.mxu0 0.0
        %968 = vmatprep.subr.mxu0 0.0
        %969 = vmatpush1.msra.mxu0 0.0
        %970 = vmatprep.subr.mxu0 0.0
        %971 = vmatpush1.msra.mxu0 0.0
        %972 = vmatprep.subr.mxu0 0.0
        %973 = vmatpush1.msra.mxu0 0.0
        %974 = vmatprep.subr.mxu0 0.0
        %975 = vmatpush1.msra.mxu0 0.0
        %976 = vmatprep.subr.mxu0 0.0
        %977 = vmatpush1.msra.mxu0 0.0
        %978 = vmatprep.subr.mxu0 0.0
        %979 = vmatpush1.msra.mxu0 0.0
        %980 = vmatprep.subr.mxu0 0.0
        %981 = vmatpush1.msra.mxu0 0.0
        %982 = vmatprep.subr.mxu0 0.0
        %983 = vmatpush1.msra.mxu0 0.0
        %984 = vmatprep.subr.mxu0 0.0
        %985 = vmatpush1.msra.mxu0 0.0
        %986 = vmatprep.subr.mxu0 0.0
        %987 = vmatpush1.msra.mxu0 0.0
        %988 = vmatprep.subr.mxu0 0.0
        %989 = vmatpush1.msra.mxu0 0.0
        %990 = vmatprep.subr.mxu0 0.0
        %991 = vmatpush1.msra.mxu0 0.0
        %992 = vmatprep.subr.mxu0 0.0
        %993 = vmatpush1.msra.mxu0 0.0
        %994 = vmatprep.subr.mxu0 0.0
        %995 = vmatpush1.msra.mxu0 0.0
        %996 = vmatprep.subr.mxu0 0.0
        %997 = vmatpush1.msra.mxu0 0.0
        %998 = vmatprep.subr.mxu0 0.0
        %999 = vmatpush1.msra.mxu0 0.0
        %1000 = vmatprep.mubr.f32.mxu0 0.0
        %1001 = vmatmul.mubr.f32.gmra.mrb[0].mxu0 %v934
        %v1002 = vpop.f32.mrb[0].mxu0
        %v1003 = vadd.f32 0.0, %v1002
        %v1004 = vpop.f32.mrb[0].mxu0
        %1005 = vdwg.mxu0
        %v1007 = vsel %vm666, %v1003, 0
        %1009 = vmatprep.subr.mxu0 0.0
        %1010 = vmatpush1.msra.mxu0 %v833
        %1011 = vmatprep.subr.mxu0 0.0
        %1012 = vmatpush1.msra.mxu0 0.0
        %1013 = vmatprep.subr.mxu0 0.0
        %1014 = vmatpush1.msra.mxu0 0.0
        %1015 = vmatprep.subr.mxu0 0.0
        %1016 = vmatpush1.msra.mxu0 0.0
        %1017 = vmatprep.subr.mxu0 0.0
        %1018 = vmatpush1.msra.mxu0 0.0
        %1019 = vmatprep.subr.mxu0 0.0
        %1020 = vmatpush1.msra.mxu0 0.0
        %1021 = vmatprep.subr.mxu0 0.0
        %1022 = vmatpush1.msra.mxu0 0.0
        %1023 = vmatprep.subr.mxu0 0.0
        %1024 = vmatpush1.msra.mxu0 0.0
        %1025 = vmatprep.subr.mxu0 0.0
        %1026 = vmatpush1.msra.mxu0 0.0
        %1027 = vmatprep.subr.mxu0 0.0
        %1028 = vmatpush1.msra.mxu0 0.0
        %1029 = vmatprep.subr.mxu0 0.0
        %1030 = vmatpush1.msra.mxu0 0.0
        %1031 = vmatprep.subr.mxu0 0.0
        %1032 = vmatpush1.msra.mxu0 0.0
        %1033 = vmatprep.subr.mxu0 0.0
        %1034 = vmatpush1.msra.mxu0 0.0
        %1035 = vmatprep.subr.mxu0 0.0
        %1036 = vmatpush1.msra.mxu0 0.0
        %1037 = vmatprep.subr.mxu0 0.0
        %1038 = vmatpush1.msra.mxu0 0.0
        %1039 = vmatprep.subr.mxu0 0.0
        %1040 = vmatpush1.msra.mxu0 0.0
        %1041 = vmatprep.subr.mxu0 0.0
        %1042 = vmatpush1.msra.mxu0 0.0
        %1043 = vmatprep.subr.mxu0 0.0
        %1044 = vmatpush1.msra.mxu0 0.0
        %1045 = vmatprep.subr.mxu0 0.0
        %1046 = vmatpush1.msra.mxu0 0.0
        %1047 = vmatprep.subr.mxu0 0.0
        %1048 = vmatpush1.msra.mxu0 0.0
        %1049 = vmatprep.subr.mxu0 0.0
        %1050 = vmatpush1.msra.mxu0 0.0
        %1051 = vmatprep.subr.mxu0 0.0
        %1052 = vmatpush1.msra.mxu0 0.0
        %1053 = vmatprep.subr.mxu0 0.0
        %1054 = vmatpush1.msra.mxu0 0.0
        %1055 = vmatprep.subr.mxu0 0.0
        %1056 = vmatpush1.msra.mxu0 0.0
        %1057 = vmatprep.subr.mxu0 0.0
        %1058 = vmatpush1.msra.mxu0 0.0
        %1059 = vmatprep.subr.mxu0 0.0
        %1060 = vmatpush1.msra.mxu0 0.0
        %1061 = vmatprep.subr.mxu0 0.0
        %1062 = vmatpush1.msra.mxu0 0.0
        %1063 = vmatprep.subr.mxu0 0.0
        %1064 = vmatpush1.msra.mxu0 0.0
        %1065 = vmatprep.subr.mxu0 0.0
        %1066 = vmatpush1.msra.mxu0 0.0
        %1067 = vmatprep.subr.mxu0 0.0
        %1068 = vmatpush1.msra.mxu0 0.0
        %1069 = vmatprep.subr.mxu0 0.0
        %1070 = vmatpush1.msra.mxu0 0.0
        %1071 = vmatprep.subr.mxu0 0.0
        %1072 = vmatpush1.msra.mxu0 0.0
        %1073 = vmatprep.mubr.f32.mxu0 0.0
        %1074 = vmatmul.mubr.f32.gmra.mrb[0].mxu0 %v1007
        %v1075 = vpop.f32.mrb[0].mxu0
        %v1076 = vadd.f32 0.0, %v1075
        %v1077 = vpop.f32.mrb[0].mxu0
        %1078 = vdwg.mxu0
        %v1080 = vsel %vm666, %v830, 0
        %1082 = vmatprep.subr.mxu0 0.0
        %1083 = vmatpush1.msra.mxu0 %v665
        %1084 = vmatprep.subr.mxu0 0.0
        %1085 = vmatpush1.msra.mxu0 0.0
        %1086 = vmatprep.subr.mxu0 0.0
        %1087 = vmatpush1.msra.mxu0 0.0
        %1088 = vmatprep.subr.mxu0 0.0
        %1089 = vmatpush1.msra.mxu0 0.0
        %1090 = vmatprep.subr.mxu0 0.0
        %1091 = vmatpush1.msra.mxu0 0.0
        %1092 = vmatprep.subr.mxu0 0.0
        %1093 = vmatpush1.msra.mxu0 0.0
        %1094 = vmatprep.subr.mxu0 0.0
        %1095 = vmatpush1.msra.mxu0 0.0
        %1096 = vmatprep.subr.mxu0 0.0
        %1097 = vmatpush1.msra.mxu0 0.0
        %1098 = vmatprep.subr.mxu0 0.0
        %1099 = vmatpush1.msra.mxu0 0.0
        %1100 = vmatprep.subr.mxu0 0.0
        %1101 = vmatpush1.msra.mxu0 0.0
        %1102 = vmatprep.subr.mxu0 0.0
        %1103 = vmatpush1.msra.mxu0 0.0
        %1104 = vmatprep.subr.mxu0 0.0
        %1105 = vmatpush1.msra.mxu0 0.0
        %1106 = vmatprep.subr.mxu0 0.0
        %1107 = vmatpush1.msra.mxu0 0.0
        %1108 = vmatprep.subr.mxu0 0.0
        %1109 = vmatpush1.msra.mxu0 0.0
        %1110 = vmatprep.subr.mxu0 0.0
        %1111 = vmatpush1.msra.mxu0 0.0
        %1112 = vmatprep.subr.mxu0 0.0
        %1113 = vmatpush1.msra.mxu0 0.0
        %1114 = vmatprep.subr.mxu0 0.0
        %1115 = vmatpush1.msra.mxu0 0.0
        %1116 = vmatprep.subr.mxu0 0.0
        %1117 = vmatpush1.msra.mxu0 0.0
        %1118 = vmatprep.subr.mxu0 0.0
        %1119 = vmatpush1.msra.mxu0 0.0
        %1120 = vmatprep.subr.mxu0 0.0
        %1121 = vmatpush1.msra.mxu0 0.0
        %1122 = vmatprep.subr.mxu0 0.0
        %1123 = vmatpush1.msra.mxu0 0.0
        %1124 = vmatprep.subr.mxu0 0.0
        %1125 = vmatpush1.msra.mxu0 0.0
        %1126 = vmatprep.subr.mxu0 0.0
        %1127 = vmatpush1.msra.mxu0 0.0
        %1128 = vmatprep.subr.mxu0 0.0
        %1129 = vmatpush1.msra.mxu0 0.0
        %1130 = vmatprep.subr.mxu0 0.0
        %1131 = vmatpush1.msra.mxu0 0.0
        %1132 = vmatprep.subr.mxu0 0.0
        %1133 = vmatpush1.msra.mxu0 0.0
        %1134 = vmatprep.subr.mxu0 0.0
        %1135 = vmatpush1.msra.mxu0 0.0
        %1136 = vmatprep.subr.mxu0 0.0
        %1137 = vmatpush1.msra.mxu0 0.0
        %1138 = vmatprep.subr.mxu0 0.0
        %1139 = vmatpush1.msra.mxu0 0.0
        %1140 = vmatprep.subr.mxu0 0.0
        %1141 = vmatpush1.msra.mxu0 0.0
        %1142 = vmatprep.subr.mxu0 0.0
        %1143 = vmatpush1.msra.mxu0 0.0
        %1144 = vmatprep.subr.mxu0 0.0
        %1145 = vmatpush1.msra.mxu0 0.0
        %1146 = vmatprep.mubr.f32.mxu0 0.0
        %1147 = vmatmul.mubr.f32.gmra.mrb[0].mxu0 %v1080
        %v1148 = vpop.f32.mrb[0].mxu0
        %v1149 = vadd.f32 %v1076, %v1148
        %v1150 = vpop.f32.mrb[0].mxu0
        %1151 = vdwg.mxu0
        %v1152 = vld [vmem:[%s5 + $0x10] sm:$0xff]
        %1153 = vrot.lane.b32.xlu0 %v660, 112
        %v1154 = vpop.permute.xlu0 %1153
        %1155 = vrot.lane.b32.xlu0 %v663, 112
        %v1156 = vpop.permute.xlu0 %1155
        %v1157 = vsel %vm666, %v1154, 0
        %v1159 = vsel %vm666, %v1156, 0
        %1161 = vmatprep.subr.mxu0 0.0
        %1162 = vmatpush1.xpose.msra.mxu0 %v1159
        %1163 = vmatprep.subr.mxu0 0.0
        %1164 = vmatpush1.xpose.msra.mxu0 0.0
        %1165 = vmatprep.subr.mxu0 0.0
        %1166 = vmatpush1.xpose.msra.mxu0 0.0
        %1167 = vmatprep.subr.mxu0 0.0
        %1168 = vmatpush1.xpose.msra.mxu0 0.0
        %1169 = vmatprep.subr.mxu0 0.0
        %1170 = vmatpush1.xpose.msra.mxu0 0.0
        %1171 = vmatprep.subr.mxu0 0.0
        %1172 = vmatpush1.xpose.msra.mxu0 0.0
        %1173 = vmatprep.subr.mxu0 0.0
        %1174 = vmatpush1.xpose.msra.mxu0 0.0
        %1175 = vmatprep.subr.mxu0 0.0
        %1176 = vmatpush1.xpose.msra.mxu0 0.0
        %1177 = vmatprep.subr.mxu0 0.0
        %1178 = vmatpush1.xpose.msra.mxu0 0.0
        %1179 = vmatprep.subr.mxu0 0.0
        %1180 = vmatpush1.xpose.msra.mxu0 0.0
        %1181 = vmatprep.subr.mxu0 0.0
        %1182 = vmatpush1.xpose.msra.mxu0 0.0
        %1183 = vmatprep.subr.mxu0 0.0
        %1184 = vmatpush1.xpose.msra.mxu0 0.0
        %1185 = vmatprep.subr.mxu0 0.0
        %1186 = vmatpush1.xpose.msra.mxu0 0.0
        %1187 = vmatprep.subr.mxu0 0.0
        %1188 = vmatpush1.xpose.msra.mxu0 0.0
        %1189 = vmatprep.subr.mxu0 0.0
        %1190 = vmatpush1.xpose.msra.mxu0 0.0
        %1191 = vmatprep.subr.mxu0 0.0
        %1192 = vmatpush1.xpose.msra.mxu0 0.0
        %1193 = vmatprep.subr.mxu0 0.0
        %1194 = vmatpush1.xpose.msra.mxu0 0.0
        %1195 = vmatprep.subr.mxu0 0.0
        %1196 = vmatpush1.xpose.msra.mxu0 0.0
        %1197 = vmatprep.subr.mxu0 0.0
        %1198 = vmatpush1.xpose.msra.mxu0 0.0
        %1199 = vmatprep.subr.mxu0 0.0
        %1200 = vmatpush1.xpose.msra.mxu0 0.0
        %1201 = vmatprep.subr.mxu0 0.0
        %1202 = vmatpush1.xpose.msra.mxu0 0.0
        %1203 = vmatprep.subr.mxu0 0.0
        %1204 = vmatpush1.xpose.msra.mxu0 0.0
        %1205 = vmatprep.subr.mxu0 0.0
        %1206 = vmatpush1.xpose.msra.mxu0 0.0
        %1207 = vmatprep.subr.mxu0 0.0
        %1208 = vmatpush1.xpose.msra.mxu0 0.0
        %1209 = vmatprep.subr.mxu0 0.0
        %1210 = vmatpush1.xpose.msra.mxu0 0.0
        %1211 = vmatprep.subr.mxu0 0.0
        %1212 = vmatpush1.xpose.msra.mxu0 0.0
        %1213 = vmatprep.subr.mxu0 0.0
        %1214 = vmatpush1.xpose.msra.mxu0 0.0
        %1215 = vmatprep.subr.mxu0 0.0
        %1216 = vmatpush1.xpose.msra.mxu0 0.0
        %1217 = vmatprep.subr.mxu0 0.0
        %1218 = vmatpush1.xpose.msra.mxu0 0.0
        %1219 = vmatprep.subr.mxu0 0.0
        %1220 = vmatpush1.xpose.msra.mxu0 0.0
        %1221 = vmatprep.subr.mxu0 0.0
        %1222 = vmatpush1.xpose.msra.mxu0 0.0
        %1223 = vmatprep.subr.mxu0 0.0
        %1224 = vmatpush1.xpose.msra.mxu0 0.0
        %1225 = vmatprep.mubr.f32.mxu0 0.0
        %1226 = vmatmul.mubr.f32.gmra.mrb[0].mxu0 %v1157
        %v1227 = vpop.f32.mrb[0].mxu0
        %v1228 = vadd.f32 0.0, %v1227
        %v1229 = vpop.f32.mrb[0].mxu0
        %1230 = vdwg.mxu0
        %vm1231 = vcmp.ne.f32.partialorder %v1228, %v1228
        %v1232 = vsel %vm1231, 0.0, %v1228
        %vm1233 = vcmp.eq.f32.partialorder %v1232, inf
        %v1234 = vsel %vm1233, 10.0, %v1232
        %vm1235 = vcmp.eq.f32.partialorder %v1234, -inf
        %v1236 = vsel %vm1235, -10.0, %v1234
        %v1237 = vsel %vm666, %v1236, -inf
        %1238 = vmax.xlane.f32.xlu0 %v1237
        %v1239 = vpop.xlane.xlu0 %1238
        %v1240 = vsub.f32 %v1236, %v1239
        %v1241 = vmul.f32 %v1240, 1.442695
        %v1242 = vpow.pop %v1241
        %v1243 = vsel %vm666, %v1242, 0.0
        %1244 = vadd.xlane.f32.xlu0 %v1243
        %v1245 = vpop.xlane.xlu0 %1244
        %v1246 = vrcp.pop %v1245
        %v1247 = vmul.f32 %v1242, %v1246
        %1248 = vrot.lane.b32.xlu0 %v664, 112
        %v1249 = vpop.permute.xlu0 %1248
        %v1252 = vsel %vm666, %v1247, 0
        %1254 = vmatprep.subr.mxu0 0.0
        %1255 = vmatpush1.msra.mxu0 %v1249
        %1256 = vmatprep.subr.mxu0 0.0
        %1257 = vmatpush1.msra.mxu0 0.0
        %1258 = vmatprep.subr.mxu0 0.0
        %1259 = vmatpush1.msra.mxu0 0.0
        %1260 = vmatprep.subr.mxu0 0.0
        %1261 = vmatpush1.msra.mxu0 0.0
        %1262 = vmatprep.subr.mxu0 0.0
        %1263 = vmatpush1.msra.mxu0 0.0
        %1264 = vmatprep.subr.mxu0 0.0
        %1265 = vmatpush1.msra.mxu0 0.0
        %1266 = vmatprep.subr.mxu0 0.0
        %1267 = vmatpush1.msra.mxu0 0.0
        %1268 = vmatprep.subr.mxu0 0.0
        %1269 = vmatpush1.msra.mxu0 0.0
        %1270 = vmatprep.subr.mxu0 0.0
        %1271 = vmatpush1.msra.mxu0 0.0
        %1272 = vmatprep.subr.mxu0 0.0
        %1273 = vmatpush1.msra.mxu0 0.0
        %1274 = vmatprep.subr.mxu0 0.0
        %1275 = vmatpush1.msra.mxu0 0.0
        %1276 = vmatprep.subr.mxu0 0.0
        %1277 = vmatpush1.msra.mxu0 0.0
        %1278 = vmatprep.subr.mxu0 0.0
        %1279 = vmatpush1.msra.mxu0 0.0
        %1280 = vmatprep.subr.mxu0 0.0
        %1281 = vmatpush1.msra.mxu0 0.0
        %1282 = vmatprep.subr.mxu0 0.0
        %1283 = vmatpush1.msra.mxu0 0.0
        %1284 = vmatprep.subr.mxu0 0.0
        %1285 = vmatpush1.msra.mxu0 0.0
        %1286 = vmatprep.subr.mxu0 0.0
        %1287 = vmatpush1.msra.mxu0 0.0
        %1288 = vmatprep.subr.mxu0 0.0
        %1289 = vmatpush1.msra.mxu0 0.0
        %1290 = vmatprep.subr.mxu0 0.0
        %1291 = vmatpush1.msra.mxu0 0.0
        %1292 = vmatprep.subr.mxu0 0.0
        %1293 = vmatpush1.msra.mxu0 0.0
        %1294 = vmatprep.subr.mxu0 0.0
        %1295 = vmatpush1.msra.mxu0 0.0
        %1296 = vmatprep.subr.mxu0 0.0
        %1297 = vmatpush1.msra.mxu0 0.0
        %1298 = vmatprep.subr.mxu0 0.0
        %1299 = vmatpush1.msra.mxu0 0.0
        %1300 = vmatprep.subr.mxu0 0.0
        %1301 = vmatpush1.msra.mxu0 0.0
        %1302 = vmatprep.subr.mxu0 0.0
        %1303 = vmatpush1.msra.mxu0 0.0
        %1304 = vmatprep.subr.mxu0 0.0
        %1305 = vmatpush1.msra.mxu0 0.0
        %1306 = vmatprep.subr.mxu0 0.0
        %1307 = vmatpush1.msra.mxu0 0.0
        %1308 = vmatprep.subr.mxu0 0.0
        %1309 = vmatpush1.msra.mxu0 0.0
        %1310 = vmatprep.subr.mxu0 0.0
        %1311 = vmatpush1.msra.mxu0 0.0
        %1312 = vmatprep.subr.mxu0 0.0
        %1313 = vmatpush1.msra.mxu0 0.0
        %1314 = vmatprep.subr.mxu0 0.0
        %1315 = vmatpush1.msra.mxu0 0.0
        %1316 = vmatprep.subr.mxu0 0.0
        %1317 = vmatpush1.msra.mxu0 0.0
        %1318 = vmatprep.mubr.f32.mxu0 0.0
        %1319 = vmatmul.mubr.f32.gmra.mrb[0].mxu0 %v1252
        %v1320 = vpop.f32.mrb[0].mxu0
        %v1321 = vadd.f32 0.0, %v1320
        %v1322 = vpop.f32.mrb[0].mxu0
        %1323 = vdwg.mxu0
        %v1325 = vsel %vm666, %v1321, 0
        %1327 = vmatprep.subr.mxu0 0.0
        %1328 = vmatpush1.msra.mxu0 %v1152
        %1329 = vmatprep.subr.mxu0 0.0
        %1330 = vmatpush1.msra.mxu0 0.0
        %1331 = vmatprep.subr.mxu0 0.0
        %1332 = vmatpush1.msra.mxu0 0.0
        %1333 = vmatprep.subr.mxu0 0.0
        %1334 = vmatpush1.msra.mxu0 0.0
        %1335 = vmatprep.subr.mxu0 0.0
        %1336 = vmatpush1.msra.mxu0 0.0
        %1337 = vmatprep.subr.mxu0 0.0
        %1338 = vmatpush1.msra.mxu0 0.0
        %1339 = vmatprep.subr.mxu0 0.0
        %1340 = vmatpush1.msra.mxu0 0.0
        %1341 = vmatprep.subr.mxu0 0.0
        %1342 = vmatpush1.msra.mxu0 0.0
        %1343 = vmatprep.subr.mxu0 0.0
        %1344 = vmatpush1.msra.mxu0 0.0
        %1345 = vmatprep.subr.mxu0 0.0
        %1346 = vmatpush1.msra.mxu0 0.0
        %1347 = vmatprep.subr.mxu0 0.0
        %1348 = vmatpush1.msra.mxu0 0.0
        %1349 = vmatprep.subr.mxu0 0.0
        %1350 = vmatpush1.msra.mxu0 0.0
        %1351 = vmatprep.subr.mxu0 0.0
        %1352 = vmatpush1.msra.mxu0 0.0
        %1353 = vmatprep.subr.mxu0 0.0
        %1354 = vmatpush1.msra.mxu0 0.0
        %1355 = vmatprep.subr.mxu0 0.0
        %1356 = vmatpush1.msra.mxu0 0.0
        %1357 = vmatprep.subr.mxu0 0.0
        %1358 = vmatpush1.msra.mxu0 0.0
        %1359 = vmatprep.subr.mxu0 0.0
        %1360 = vmatpush1.msra.mxu0 0.0
        %1361 = vmatprep.subr.mxu0 0.0
        %1362 = vmatpush1.msra.mxu0 0.0
        %1363 = vmatprep.subr.mxu0 0.0
        %1364 = vmatpush1.msra.mxu0 0.0
        %1365 = vmatprep.subr.mxu0 0.0
        %1366 = vmatpush1.msra.mxu0 0.0
        %1367 = vmatprep.subr.mxu0 0.0
        %1368 = vmatpush1.msra.mxu0 0.0
        %1369 = vmatprep.subr.mxu0 0.0
        %1370 = vmatpush1.msra.mxu0 0.0
        %1371 = vmatprep.subr.mxu0 0.0
        %1372 = vmatpush1.msra.mxu0 0.0
        %1373 = vmatprep.subr.mxu0 0.0
        %1374 = vmatpush1.msra.mxu0 0.0
        %1375 = vmatprep.subr.mxu0 0.0
        %1376 = vmatpush1.msra.mxu0 0.0
        %1377 = vmatprep.subr.mxu0 0.0
        %1378 = vmatpush1.msra.mxu0 0.0
        %1379 = vmatprep.subr.mxu0 0.0
        %1380 = vmatpush1.msra.mxu0 0.0
        %1381 = vmatprep.subr.mxu0 0.0
        %1382 = vmatpush1.msra.mxu0 0.0
        %1383 = vmatprep.subr.mxu0 0.0
        %1384 = vmatpush1.msra.mxu0 0.0
        %1385 = vmatprep.subr.mxu0 0.0
        %1386 = vmatpush1.msra.mxu0 0.0
        %1387 = vmatprep.subr.mxu0 0.0
        %1388 = vmatpush1.msra.mxu0 0.0
        %1389 = vmatprep.subr.mxu0 0.0
        %1390 = vmatpush1.msra.mxu0 0.0
        %1391 = vmatprep.mubr.f32.mxu0 0.0
        %1392 = vmatmul.mubr.f32.gmra.mrb[0].mxu0 %v1325
        %v1393 = vpop.f32.mrb[0].mxu0
        %v1394 = vadd.f32 0.0, %v1393
        %v1395 = vpop.f32.mrb[0].mxu0
        %1396 = vdwg.mxu0
        %v1397 = vadd.f32 %v1149, %v1394
        %v1398 = vld [vmem:[%s5 + $0x18] sm:$0xff]
        %1399 = vrot.lane.b32.xlu0 %v660, 104
        %v1400 = vpop.permute.xlu0 %1399
        %1401 = vrot.lane.b32.xlu0 %v663, 104
        %v1402 = vpop.permute.xlu0 %1401
        %v1403 = vsel %vm666, %v1400, 0
        %v1405 = vsel %vm666, %v1402, 0
        %1407 = vmatprep.subr.mxu0 0.0
        %1408 = vmatpush1.xpose.msra.mxu0 %v1405
        %1409 = vmatprep.subr.mxu0 0.0
        %1410 = vmatpush1.xpose.msra.mxu0 0.0
        %1411 = vmatprep.subr.mxu0 0.0
        %1412 = vmatpush1.xpose.msra.mxu0 0.0
        %1413 = vmatprep.subr.mxu0 0.0
        %1414 = vmatpush1.xpose.msra.mxu0 0.0
        %1415 = vmatprep.subr.mxu0 0.0
        %1416 = vmatpush1.xpose.msra.mxu0 0.0
        %1417 = vmatprep.subr.mxu0 0.0
        %1418 = vmatpush1.xpose.msra.mxu0 0.0
        %1419 = vmatprep.subr.mxu0 0.0
        %1420 = vmatpush1.xpose.msra.mxu0 0.0
        %1421 = vmatprep.subr.mxu0 0.0
        %1422 = vmatpush1.xpose.msra.mxu0 0.0
        %1423 = vmatprep.subr.mxu0 0.0
        %1424 = vmatpush1.xpose.msra.mxu0 0.0
        %1425 = vmatprep.subr.mxu0 0.0
        %1426 = vmatpush1.xpose.msra.mxu0 0.0
        %1427 = vmatprep.subr.mxu0 0.0
        %1428 = vmatpush1.xpose.msra.mxu0 0.0
        %1429 = vmatprep.subr.mxu0 0.0
        %1430 = vmatpush1.xpose.msra.mxu0 0.0
        %1431 = vmatprep.subr.mxu0 0.0
        %1432 = vmatpush1.xpose.msra.mxu0 0.0
        %1433 = vmatprep.subr.mxu0 0.0
        %1434 = vmatpush1.xpose.msra.mxu0 0.0
        %1435 = vmatprep.subr.mxu0 0.0
        %1436 = vmatpush1.xpose.msra.mxu0 0.0
        %1437 = vmatprep.subr.mxu0 0.0
        %1438 = vmatpush1.xpose.msra.mxu0 0.0
        %1439 = vmatprep.subr.mxu0 0.0
        %1440 = vmatpush1.xpose.msra.mxu0 0.0
        %1441 = vmatprep.subr.mxu0 0.0
        %1442 = vmatpush1.xpose.msra.mxu0 0.0
        %1443 = vmatprep.subr.mxu0 0.0
        %1444 = vmatpush1.xpose.msra.mxu0 0.0
        %1445 = vmatprep.subr.mxu0 0.0
        %1446 = vmatpush1.xpose.msra.mxu0 0.0
        %1447 = vmatprep.subr.mxu0 0.0
        %1448 = vmatpush1.xpose.msra.mxu0 0.0
        %1449 = vmatprep.subr.mxu0 0.0
        %1450 = vmatpush1.xpose.msra.mxu0 0.0
        %1451 = vmatprep.subr.mxu0 0.0
        %1452 = vmatpush1.xpose.msra.mxu0 0.0
        %1453 = vmatprep.subr.mxu0 0.0
        %1454 = vmatpush1.xpose.msra.mxu0 0.0
        %1455 = vmatprep.subr.mxu0 0.0
        %1456 = vmatpush1.xpose.msra.mxu0 0.0
        %1457 = vmatprep.subr.mxu0 0.0
        %1458 = vmatpush1.xpose.msra.mxu0 0.0
        %1459 = vmatprep.subr.mxu0 0.0
        %1460 = vmatpush1.xpose.msra.mxu0 0.0
        %1461 = vmatprep.subr.mxu0 0.0
        %1462 = vmatpush1.xpose.msra.mxu0 0.0
        %1463 = vmatprep.subr.mxu0 0.0
        %1464 = vmatpush1.xpose.msra.mxu0 0.0
        %1465 = vmatprep.subr.mxu0 0.0
        %1466 = vmatpush1.xpose.msra.mxu0 0.0
        %1467 = vmatprep.subr.mxu0 0.0
        %1468 = vmatpush1.xpose.msra.mxu0 0.0
        %1469 = vmatprep.subr.mxu0 0.0
        %1470 = vmatpush1.xpose.msra.mxu0 0.0
        %1471 = vmatprep.mubr.f32.mxu0 0.0
        %1472 = vmatmul.mubr.f32.gmra.mrb[0].mxu0 %v1403
        %v1473 = vpop.f32.mrb[0].mxu0
        %v1474 = vadd.f32 0.0, %v1473
        %v1475 = vpop.f32.mrb[0].mxu0
        %1476 = vdwg.mxu0
        %vm1477 = vcmp.ne.f32.partialorder %v1474, %v1474
        %v1478 = vsel %vm1477, 0.0, %v1474
        %vm1479 = vcmp.eq.f32.partialorder %v1478, inf
        %v1480 = vsel %vm1479, 10.0, %v1478
        %vm1481 = vcmp.eq.f32.partialorder %v1480, -inf
        %v1482 = vsel %vm1481, -10.0, %v1480
        %v1483 = vsel %vm666, %v1482, -inf
        %1484 = vmax.xlane.f32.xlu0 %v1483
        %v1485 = vpop.xlane.xlu0 %1484
        %v1486 = vsub.f32 %v1482, %v1485
        %v1487 = vmul.f32 %v1486, 1.442695
        %v1488 = vpow.pop %v1487
        %v1489 = vsel %vm666, %v1488, 0.0
        %1490 = vadd.xlane.f32.xlu0 %v1489
        %v1491 = vpop.xlane.xlu0 %1490
        %v1492 = vrcp.pop %v1491
        %v1493 = vmul.f32 %v1488, %v1492
        %1494 = vrot.lane.b32.xlu0 %v664, 104
        %v1495 = vpop.permute.xlu0 %1494
        %v1498 = vsel %vm666, %v1493, 0
        %1500 = vmatprep.subr.mxu0 0.0
        %1501 = vmatpush1.msra.mxu0 %v1495
        %1502 = vmatprep.subr.mxu0 0.0
        %1503 = vmatpush1.msra.mxu0 0.0
        %1504 = vmatprep.subr.mxu0 0.0
        %1505 = vmatpush1.msra.mxu0 0.0
        %1506 = vmatprep.subr.mxu0 0.0
        %1507 = vmatpush1.msra.mxu0 0.0
        %1508 = vmatprep.subr.mxu0 0.0
        %1509 = vmatpush1.msra.mxu0 0.0
        %1510 = vmatprep.subr.mxu0 0.0
        %1511 = vmatpush1.msra.mxu0 0.0
        %1512 = vmatprep.subr.mxu0 0.0
        %1513 = vmatpush1.msra.mxu0 0.0
        %1514 = vmatprep.subr.mxu0 0.0
        %1515 = vmatpush1.msra.mxu0 0.0
        %1516 = vmatprep.subr.mxu0 0.0
        %1517 = vmatpush1.msra.mxu0 0.0
        %1518 = vmatprep.subr.mxu0 0.0
        %1519 = vmatpush1.msra.mxu0 0.0
        %1520 = vmatprep.subr.mxu0 0.0
        %1521 = vmatpush1.msra.mxu0 0.0
        %1522 = vmatprep.subr.mxu0 0.0
        %1523 = vmatpush1.msra.mxu0 0.0
        %1524 = vmatprep.subr.mxu0 0.0
        %1525 = vmatpush1.msra.mxu0 0.0
        %1526 = vmatprep.subr.mxu0 0.0
        %1527 = vmatpush1.msra.mxu0 0.0
        %1528 = vmatprep.subr.mxu0 0.0
        %1529 = vmatpush1.msra.mxu0 0.0
        %1530 = vmatprep.subr.mxu0 0.0
        %1531 = vmatpush1.msra.mxu0 0.0
        %1532 = vmatprep.subr.mxu0 0.0
        %1533 = vmatpush1.msra.mxu0 0.0
        %1534 = vmatprep.subr.mxu0 0.0
        %1535 = vmatpush1.msra.mxu0 0.0
        %1536 = vmatprep.subr.mxu0 0.0
        %1537 = vmatpush1.msra.mxu0 0.0
        %1538 = vmatprep.subr.mxu0 0.0
        %1539 = vmatpush1.msra.mxu0 0.0
        %1540 = vmatprep.subr.mxu0 0.0
        %1541 = vmatpush1.msra.mxu0 0.0
        %1542 = vmatprep.subr.mxu0 0.0
        %1543 = vmatpush1.msra.mxu0 0.0
        %1544 = vmatprep.subr.mxu0 0.0
        %1545 = vmatpush1.msra.mxu0 0.0
        %1546 = vmatprep.subr.mxu0 0.0
        %1547 = vmatpush1.msra.mxu0 0.0
        %1548 = vmatprep.subr.mxu0 0.0
        %1549 = vmatpush1.msra.mxu0 0.0
        %1550 = vmatprep.subr.mxu0 0.0
        %1551 = vmatpush1.msra.mxu0 0.0
        %1552 = vmatprep.subr.mxu0 0.0
        %1553 = vmatpush1.msra.mxu0 0.0
        %1554 = vmatprep.subr.mxu0 0.0
        %1555 = vmatpush1.msra.mxu0 0.0
        %1556 = vmatprep.subr.mxu0 0.0
        %1557 = vmatpush1.msra.mxu0 0.0
        %1558 = vmatprep.subr.mxu0 0.0
        %1559 = vmatpush1.msra.mxu0 0.0
        %1560 = vmatprep.subr.mxu0 0.0
        %1561 = vmatpush1.msra.mxu0 0.0
        %1562 = vmatprep.subr.mxu0 0.0
        %1563 = vmatpush1.msra.mxu0 0.0
        %1564 = vmatprep.mubr.f32.mxu0 0.0
        %1565 = vmatmul.mubr.f32.gmra.mrb[0].mxu0 %v1498
        %v1566 = vpop.f32.mrb[0].mxu0
        %v1567 = vadd.f32 0.0, %v1566
        %v1568 = vpop.f32.mrb[0].mxu0
        %1569 = vdwg.mxu0
        %v1571 = vsel %vm666, %v1567, 0
        %1573 = vmatprep.subr.mxu0 0.0
        %1574 = vmatpush1.msra.mxu0 %v1398
        %1575 = vmatprep.subr.mxu0 0.0
        %1576 = vmatpush1.msra.mxu0 0.0
        %1577 = vmatprep.subr.mxu0 0.0
        %1578 = vmatpush1.msra.mxu0 0.0
        %1579 = vmatprep.subr.mxu0 0.0
        %1580 = vmatpush1.msra.mxu0 0.0
        %1581 = vmatprep.subr.mxu0 0.0
        %1582 = vmatpush1.msra.mxu0 0.0
        %1583 = vmatprep.subr.mxu0 0.0
        %1584 = vmatpush1.msra.mxu0 0.0
        %1585 = vmatprep.subr.mxu0 0.0
        %1586 = vmatpush1.msra.mxu0 0.0
        %1587 = vmatprep.subr.mxu0 0.0
        %1588 = vmatpush1.msra.mxu0 0.0
        %1589 = vmatprep.subr.mxu0 0.0
        %1590 = vmatpush1.msra.mxu0 0.0
        %1591 = vmatprep.subr.mxu0 0.0
        %1592 = vmatpush1.msra.mxu0 0.0
        %1593 = vmatprep.subr.mxu0 0.0
        %1594 = vmatpush1.msra.mxu0 0.0
        %1595 = vmatprep.subr.mxu0 0.0
        %1596 = vmatpush1.msra.mxu0 0.0
        %1597 = vmatprep.subr.mxu0 0.0
        %1598 = vmatpush1.msra.mxu0 0.0
        %1599 = vmatprep.subr.mxu0 0.0
        %1600 = vmatpush1.msra.mxu0 0.0
        %1601 = vmatprep.subr.mxu0 0.0
        %1602 = vmatpush1.msra.mxu0 0.0
        %1603 = vmatprep.subr.mxu0 0.0
        %1604 = vmatpush1.msra.mxu0 0.0
        %1605 = vmatprep.subr.mxu0 0.0
        %1606 = vmatpush1.msra.mxu0 0.0
        %1607 = vmatprep.subr.mxu0 0.0
        %1608 = vmatpush1.msra.mxu0 0.0
        %1609 = vmatprep.subr.mxu0 0.0
        %1610 = vmatpush1.msra.mxu0 0.0
        %1611 = vmatprep.subr.mxu0 0.0
        %1612 = vmatpush1.msra.mxu0 0.0
        %1613 = vmatprep.subr.mxu0 0.0
        %1614 = vmatpush1.msra.mxu0 0.0
        %1615 = vmatprep.subr.mxu0 0.0
        %1616 = vmatpush1.msra.mxu0 0.0
        %1617 = vmatprep.subr.mxu0 0.0
        %1618 = vmatpush1.msra.mxu0 0.0
        %1619 = vmatprep.subr.mxu0 0.0
        %1620 = vmatpush1.msra.mxu0 0.0
        %1621 = vmatprep.subr.mxu0 0.0
        %1622 = vmatpush1.msra.mxu0 0.0
        %1623 = vmatprep.subr.mxu0 0.0
        %1624 = vmatpush1.msra.mxu0 0.0
        %1625 = vmatprep.subr.mxu0 0.0
        %1626 = vmatpush1.msra.mxu0 0.0
        %1627 = vmatprep.subr.mxu0 0.0
        %1628 = vmatpush1.msra.mxu0 0.0
        %1629 = vmatprep.subr.mxu0 0.0
        %1630 = vmatpush1.msra.mxu0 0.0
        %1631 = vmatprep.subr.mxu0 0.0
        %1632 = vmatpush1.msra.mxu0 0.0
        %1633 = vmatprep.subr.mxu0 0.0
        %1634 = vmatpush1.msra.mxu0 0.0
        %1635 = vmatprep.subr.mxu0 0.0
        %1636 = vmatpush1.msra.mxu0 0.0
        %1637 = vmatprep.mubr.f32.mxu0 0.0
        %1638 = vmatmul.mubr.f32.gmra.mrb[0].mxu0 %v1571
        %v1639 = vpop.f32.mrb[0].mxu0
        %v1640 = vadd.f32 0.0, %v1639
        %v1641 = vpop.f32.mrb[0].mxu0
        %1642 = vdwg.mxu0
        %v1643 = vadd.f32 %v1397, %v1640
        %1644 = vst.msk [vmem:[%s340] sm:$0xff] %vm589, %v1643
        %s1645 = sand.u32 %s182, 1
        %s1646 = scalar_lea.sflag [#allocation6], %s1645
        %s1647 = sand.u32 %s182, 1
        %s1648 = smul.addr %s1647, 8
        %s1649 = scalar_lea.vmem [#allocation10], %s1648
        %s1650 = sand.u32 %s208, 1
        %s1651 = scalar_lea.sflag [#allocation12], %s1650
        %s1652 = sand.u32 %s208, 1
        %s1653 = smul.addr %s1652, 8
        %s1654 = scalar_lea.vmem [#allocation11], %s1653
        // Predicated region
        $region61: #{tpu_custom_call.1} parent=43 // pred_check
          %p1655 = pneg %p192
        $region62: #{tpu_custom_call.1} parent=43 // pred_check_branch
          %1657 = sbr.rel (%p1655) target = $region64
        $region63: #{tpu_custom_call.1} parent=43 // pred_region
          %s1659 = ssub.s32 128, 128
          %1660 = vsyncadd %s1646, %s1659
          %s1661 = sadd.s32 %s34, %s33
          %s1662 = smul.addr %s1661, 128
          %s1663 = scalar_lea.hbm %s6, %s1662
          %s1665 = sshll.u32 %s1649, 4
          %s1666 = int_to_ptr.vmem [resolvable:$true] %s1665
          %1668 = dma.vmem_to_hbm [thread:$0]  %s1666, 128, %s1663, %s1646
        $region64: #{tpu_custom_call.1} parent=43 // pred_fallthru
          _
        // Predicated region
        $region65: #{tpu_custom_call.1} parent=43 // pred_check
          %p1669 = pneg %p218
        $region66: #{tpu_custom_call.1} parent=43 // pred_check_branch
          %1671 = sbr.rel (%p1669) target = $region68
        $region67: #{tpu_custom_call.1} parent=43 // pred_region
          %s1673 = ssub.s32 128, 128
          %1674 = vsyncadd %s1651, %s1673
          %s1675 = smul.addr %s33, 128
          %s1676 = scalar_lea.hbm %s7, %s1675
          %s1678 = sshll.u32 %s1654, 4
          %s1679 = int_to_ptr.vmem [resolvable:$true] %s1678
          %1681 = dma.vmem_to_hbm [thread:$0]  %s1679, 128, %s1676, %s1651
        $region68: #{tpu_custom_call.1} parent=43 // pred_fallthru
          _
      $region44: #{tpu_custom_call.1} parent=5 // pred_fallthru
        _
      %p1682 = scmp.le.s32.totalorder 2, %s24
      // Predicated region
      $region69: #{tpu_custom_call.1} parent=5 // pred_check
        %p1683 = pneg %p1682
      $region70: #{tpu_custom_call.1} parent=5 // pred_check_branch
        %1685 = sbr.rel (%p1683) target = $region72
      $region71: #{tpu_custom_call.1} parent=5 // pred_region
        %s1686 = ssub.s32 %s24, 2
        // Predicated region
        $region73: #{tpu_custom_call.1} parent=71 // pred_check
          %p1687 = pneg %p198
        $region74: #{tpu_custom_call.1} parent=71 // pred_check_branch
          %1689 = sbr.rel (%p1687) target = $region76
        $region75: #{tpu_custom_call.1} parent=71 // pred_region
          %s1690 = sand.u32 %s183, 1
          %s1691 = scalar_lea.sflag [#allocation6], %s1690
          %s1692 = sand.u32 %s183, 1
          %s1693 = smul.addr %s1692, 8
          %s1694 = scalar_lea.vmem [#allocation10], %s1693
          %1695 = dma.done %s1691, 128
        $region76: #{tpu_custom_call.1} parent=71 // pred_fallthru
          _
        // Predicated region
        $region77: #{tpu_custom_call.1} parent=71 // pred_check
          %p1696 = pneg %p224
        $region78: #{tpu_custom_call.1} parent=71 // pred_check_branch
          %1698 = sbr.rel (%p1696) target = $region80
        $region79: #{tpu_custom_call.1} parent=71 // pred_region
          %s1699 = sand.u32 %s209, 1
          %s1700 = scalar_lea.sflag [#allocation12], %s1699
          %s1701 = sand.u32 %s209, 1
          %s1702 = smul.addr %s1701, 8
          %s1703 = scalar_lea.vmem [#allocation11], %s1702
          %1704 = dma.done %s1700, 128
        $region80: #{tpu_custom_call.1} parent=71 // pred_fallthru
          _
      $region72: #{tpu_custom_call.1} parent=5 // pred_fallthru
        _
    $region6: #{tpu_custom_call.1} parent=1 // loop_footer
      %s28 = sadd.s32 1, %s24
    $region7: #{tpu_custom_call.1} parent=1 // loop_footer_branch
      %23 = sbr.rel target = $region3
    $region8: #{tpu_custom_call.1} parent=1 // loop_exit
      _
    %1705 = vsyncpa [#allocation5], 1
    %s1706 = scalar_lea.sflag [#allocation5], 1
    %1707 = vsyncpa %s1706, 1
    %1708 = vsyncpa [#allocation8], 1
    %1709 = vsyncpa [#allocation6], 1
    %s1710 = scalar_lea.sflag [#allocation6], 1
    %1711 = vsyncpa %s1710, 1
    %1712 = vsyncpa [#allocation12], 1
    %s1713 = scalar_lea.sflag [#allocation12], 1
    %1714 = vsyncpa %s1713, 1

</llo_original>
